<compile_context>
chip_gen: v7x
topology: tpu7x:2x2x1
jax: 0.10.0
libtpu: 0.0.40
codegen_flags: <defaults>
</compile_context>

<pallas_src>
import functools
import math

import jax
import jax.numpy as jnp
from jax.experimental import pallas as pl
from jax.experimental.pallas import tpu as pltpu


# ---------------------------------------------------------------------------
# Fused Pallas kernel: one batch element per grid step
# ---------------------------------------------------------------------------

def _fused_mha_kernel(vlen_ref, q_ref, k_ref, v_ref,
                      wq_ref, wk_ref, wv_ref, wo_ref,
                      o_ref, *, num_heads, scale):
    # q_ref: (Tq, query_size), k_ref/v_ref: (Tk, key/value_size)
    # wq/wk/wv: (in, num_hiddens) pre-transposed, wo: (num_hiddens, num_hiddens)
    # o_ref: (Tq, num_hiddens)
    b = pl.program_id(0)

    # Projections (weights already (in, out): feed the MXU directly, no .T).
    q = jnp.dot(q_ref[...], wq_ref[...], preferred_element_type=jnp.float32)  # (Tq, H)
    k = jnp.dot(k_ref[...], wk_ref[...], preferred_element_type=jnp.float32)  # (Tk, H)
    v = jnp.dot(v_ref[...], wv_ref[...], preferred_element_type=jnp.float32)  # (Tk, H)

    tq = q.shape[0]
    tk = k.shape[0]
    dh = q.shape[1] // num_heads

    # Key-position mask, shared by every head of this batch element.
    vlen = vlen_ref[b]                                        # scalar int32 (SMEM)
    col = jax.lax.broadcasted_iota(jnp.int32, (tq, tk), 1)
    key_mask = col < vlen                                     # (Tq, Tk)

    # Heads unrolled statically (num_heads is small & compile-time constant).
    head_outs = []
    for h in range(num_heads):
        qh = q[:, h * dh:(h + 1) * dh]                        # (Tq, Dh)
        kh = k[:, h * dh:(h + 1) * dh]                        # (Tk, Dh)
        vh = v[:, h * dh:(h + 1) * dh]                        # (Tk, Dh)

        # q @ k^T as a contraction on the last dim of BOTH operands.
        scores = jax.lax.dot_general(
            qh, kh, (((1,), (1,)), ((), ())),
            preferred_element_type=jnp.float32) * scale       # (Tq, Tk)

        masked = jnp.where(key_mask, scores, jnp.float32(-1e6))

        # Numerically stable softmax along the key axis (f32 VPU/EUP math).
        m = jnp.max(masked, axis=-1, keepdims=True)
        e = jnp.exp(masked - m)
        p = e * pl.reciprocal(jnp.sum(e, axis=-1, keepdims=True), approx=True)

        head_outs.append(jnp.dot(p, vh, preferred_element_type=jnp.float32))

    # Lane-dense (Tq, num_hiddens) slab, then fused output projection.
    out_concat = jnp.concatenate(head_outs, axis=-1)          # (Tq, H)
    o_ref[...] = jnp.dot(out_concat, wo_ref[...],
                         preferred_element_type=jnp.float32).astype(o_ref.dtype)


# ---------------------------------------------------------------------------
# MultiHeadAttention forward wrapper
# ---------------------------------------------------------------------------

def multi_head_attention(params, queries, keys, values, valid_lens, num_heads):
    b, tq, q_in = queries.shape
    _, tk, k_in = keys.shape
    v_in = values.shape[-1]
    num_hiddens = params["W_q"].shape[0]
    dh = num_hiddens // num_heads

    # Pre-transpose nn.Linear weights ((out, in) -> (in, out)) once, outside
    # the kernel hot path.
    wq_t = params["W_q"].T
    wk_t = params["W_k"].T
    wv_t = params["W_v"].T
    wo_t = params["W_o"].T

    if valid_lens is None:
        vlen = jnp.full((b,), tk, dtype=jnp.int32)
    else:
        # 1-D (per-batch) valid_lens; same length applies to every head.
        # TODO(synk): 2-D valid_lens (per-query lengths) path not implemented.
        vlen = valid_lens.astype(jnp.int32)

    kernel = functools.partial(
        _fused_mha_kernel, num_heads=num_heads, scale=1.0 / math.sqrt(dh))

    grid_spec = pltpu.PrefetchScalarGridSpec(
        num_scalar_prefetch=1,
        grid=(b,),
        in_specs=[
            # Activations: one batch element per step, leading dim squeezed.
            pl.BlockSpec((None, tq, q_in), lambda i, vl: (i, 0, 0)),
            pl.BlockSpec((None, tk, k_in), lambda i, vl: (i, 0, 0)),
            pl.BlockSpec((None, tk, v_in), lambda i, vl: (i, 0, 0)),
            # Weights: full arrays, same block every step (stay resident).
            pl.BlockSpec((q_in, num_hiddens), lambda i, vl: (0, 0)),
            pl.BlockSpec((k_in, num_hiddens), lambda i, vl: (0, 0)),
            pl.BlockSpec((v_in, num_hiddens), lambda i, vl: (0, 0)),
            pl.BlockSpec((num_hiddens, num_hiddens), lambda i, vl: (0, 0)),
        ],
        out_specs=pl.BlockSpec((None, tq, num_hiddens), lambda i, vl: (i, 0, 0)),
    )

    return pl.pallas_call(
        kernel,
        out_shape=jax.ShapeDtypeStruct((b, tq, num_hiddens), jnp.float32),
        grid_spec=grid_spec,
        compiler_params=pltpu.CompilerParams(
            # Batch steps are independent -> lets v7x use both TensorCores.
            dimension_semantics=("parallel",)),
    )(vlen, queries, keys, values, wq_t, wk_t, wv_t, wo_t)


# ---------------------------------------------------------------------------
# Pure-JAX reference (mirrors the PyTorch semantics) for a sanity check
# ---------------------------------------------------------------------------

def _reference(params, queries, keys, values, valid_lens, num_heads):
    b, tq, _ = queries.shape
    tk = keys.shape[1]

    def t_qkv(x):
        bb, t, h = x.shape
        x = x.reshape(bb, t, num_heads, h // num_heads)
        x = jnp.transpose(x, (0, 2, 1, 3))
        return x.reshape(bb * num_heads, t, h // num_heads)

    q = t_qkv(queries @ params["W_q"].T)
    k = t_qkv(keys @ params["W_k"].T)
    v = t_qkv(values @ params["W_v"].T)
    d = q.shape[-1]
    scores = jnp.einsum("bqd,bkd->bqk", q, k) / math.sqrt(d)
    if valid_lens is None:
        vlen = jnp.full((b * num_heads,), tk, dtype=jnp.int32)
    else:
        vlen = jnp.repeat(valid_lens.astype(jnp.int32), num_heads, axis=0)
    col = jnp.arange(tk)[None, None, :]
    masked = jnp.where(col < vlen[:, None, None], scores, -1e6)
    p = jax.nn.softmax(masked, axis=-1)
    out = jnp.einsum("bqk,bkd->bqd", p, v)
    bh, t, dh = out.shape
    out = out.reshape(bh // num_heads, num_heads, t, dh)
    out = jnp.transpose(out, (0, 2, 1, 3)).reshape(bh // num_heads, t,
                                                   num_heads * dh)
    return out @ params["W_o"].T


# ---------------------------------------------------------------------------

if __name__ == "__main__":
    key = jax.random.PRNGKey(0)

    # Module hyperparameters
    batch = 2
    tq, tk = 8, 8
    query_size = key_size = value_size = 16
    num_hiddens = 32
    num_heads = 4
    # dropout = 0.0 (identity at inference)

    ks = jax.random.split(key, 8)
    # Deterministic parameter init (PyTorch Linear weight layout: (out, in))
    params = {
        "W_q": jax.random.normal(ks[0], (num_hiddens, query_size), jnp.float32) * 0.1,
        "W_k": jax.random.normal(ks[1], (num_hiddens, key_size), jnp.float32) * 0.1,
        "W_v": jax.random.normal(ks[2], (num_hiddens, value_size), jnp.float32) * 0.1,
        "W_o": jax.random.normal(ks[3], (num_hiddens, num_hiddens), jnp.float32) * 0.1,
    }

    queries = jax.random.normal(ks[4], (batch, tq, query_size), jnp.float32)
    keys = jax.random.normal(ks[5], (batch, tk, key_size), jnp.float32)
    values = jax.random.normal(ks[6], (batch, tk, value_size), jnp.float32)
    valid_lens = jnp.array([3, 6], dtype=jnp.int32)   # shape (batch,)

    fwd = jax.jit(functools.partial(multi_head_attention, num_heads=num_heads))
    out = fwd(params, queries, keys, values, valid_lens)
    out = jax.block_until_ready(out)

    ref = _reference(params, queries, keys, values, valid_lens, num_heads)
    assert out.shape == (batch, tq, num_hiddens)
    # Slightly looser tolerance to cover the approx (EUP) reciprocal in softmax.
    assert jnp.allclose(out, ref, atol=2e-3, rtol=2e-3), "mismatch vs reference"

    print("KERNEL_OK")
</pallas_src>

<mosaic_0001>
module attributes {stable_mosaic.version = 11 : i64} {
  func.func @_fused_mha_kernel(%arg0: i32, %arg1: memref<2xi32, #tpu.memory_space<smem>>, %arg2: memref<1x8x16xf32, #tpu.memory_space<vmem>>, %arg3: memref<1x8x16xf32, #tpu.memory_space<vmem>>, %arg4: memref<1x8x16xf32, #tpu.memory_space<vmem>>, %arg5: memref<16x32xf32, #tpu.memory_space<vmem>>, %arg6: memref<16x32xf32, #tpu.memory_space<vmem>>, %arg7: memref<16x32xf32, #tpu.memory_space<vmem>>, %arg8: memref<32x32xf32, #tpu.memory_space<vmem>>, %arg9: memref<1x8x32xf32, #tpu.memory_space<vmem>>) attributes {dimension_semantics = [#tpu.dimension_semantics<parallel>], iteration_bounds = array<i64: 2>, scalar_prefetch = 1 : i64, scratch_operands = 0 : i64, tpu.core_type = #tpu.core_type<tc>, window_params = [{transform_indices = @transform_0, window_bounds = array<i64: 1, 8, 16>}, {transform_indices = @transform_1, window_bounds = array<i64: 1, 8, 16>}, {transform_indices = @transform_2, window_bounds = array<i64: 1, 8, 16>}, {pipeline_mode = #tpu.pipeline_mode<synchronous>, transform_indices = @transform_3, window_bounds = array<i64: 16, 32>}, {pipeline_mode = #tpu.pipeline_mode<synchronous>, transform_indices = @transform_4, window_bounds = array<i64: 16, 32>}, {pipeline_mode = #tpu.pipeline_mode<synchronous>, transform_indices = @transform_5, window_bounds = array<i64: 16, 32>}, {pipeline_mode = #tpu.pipeline_mode<synchronous>, transform_indices = @transform_6, window_bounds = array<i64: 32, 32>}, {transform_indices = @transform_7, window_bounds = array<i64: 1, 8, 32>}]} {
    %c0 = arith.constant 0 : index
    %c0_0 = arith.constant 0 : index
    %c0_1 = arith.constant 0 : index
    %0 = vector.load %arg2[%c0, %c0_0, %c0_1] : memref<1x8x16xf32, #tpu.memory_space<vmem>>, vector<1x8x16xf32>
    %1 = vector.shape_cast %0 : vector<1x8x16xf32> to vector<8x16xf32>
    %c0_2 = arith.constant 0 : index
    %c0_3 = arith.constant 0 : index
    %2 = vector.load %arg5[%c0_2, %c0_3] : memref<16x32xf32, #tpu.memory_space<vmem>>, vector<16x32xf32>
    %cst = arith.constant dense<0.000000e+00> : vector<8x32xf32>
    %3 = tpu.matmul %1, %2, %cst {dimension_numbers = #tpu.dot_dimension_numbers<[1], [0], [0], [1], [0, 0, 1, 1], [], []>} : vector<8x16xf32>, vector<16x32xf32>, vector<8x32xf32> -> vector<8x32xf32>
    %c0_4 = arith.constant 0 : index
    %c0_5 = arith.constant 0 : index
    %c0_6 = arith.constant 0 : index
    %4 = vector.load %arg3[%c0_4, %c0_5, %c0_6] : memref<1x8x16xf32, #tpu.memory_space<vmem>>, vector<1x8x16xf32>
    %5 = vector.shape_cast %4 : vector<1x8x16xf32> to vector<8x16xf32>
    %c0_7 = arith.constant 0 : index
    %c0_8 = arith.constant 0 : index
    %6 = vector.load %arg6[%c0_7, %c0_8] : memref<16x32xf32, #tpu.memory_space<vmem>>, vector<16x32xf32>
    %cst_9 = arith.constant dense<0.000000e+00> : vector<8x32xf32>
    %7 = tpu.matmul %5, %6, %cst_9 {dimension_numbers = #tpu.dot_dimension_numbers<[1], [0], [0], [1], [0, 0, 1, 1], [], []>} : vector<8x16xf32>, vector<16x32xf32>, vector<8x32xf32> -> vector<8x32xf32>
    %c0_10 = arith.constant 0 : index
    %c0_11 = arith.constant 0 : index
    %c0_12 = arith.constant 0 : index
    %8 = vector.load %arg4[%c0_10, %c0_11, %c0_12] : memref<1x8x16xf32, #tpu.memory_space<vmem>>, vector<1x8x16xf32>
    %9 = vector.shape_cast %8 : vector<1x8x16xf32> to vector<8x16xf32>
    %c0_13 = arith.constant 0 : index
    %c0_14 = arith.constant 0 : index
    %10 = vector.load %arg7[%c0_13, %c0_14] : memref<16x32xf32, #tpu.memory_space<vmem>>, vector<16x32xf32>
    %cst_15 = arith.constant dense<0.000000e+00> : vector<8x32xf32>
    %11 = tpu.matmul %9, %10, %cst_15 {dimension_numbers = #tpu.dot_dimension_numbers<[1], [0], [0], [1], [0, 0, 1, 1], [], []>} : vector<8x16xf32>, vector<16x32xf32>, vector<8x32xf32> -> vector<8x32xf32>
    %12 = arith.index_cast %arg0 : i32 to index
    %13 = memref.load %arg1[%12] : memref<2xi32, #tpu.memory_space<smem>>
    %14 = tpu.iota {dimensions = array<i32: 1>} : vector<8x8xi32>
    %15 = vector.broadcast %13 : i32 to vector<8x8xi32>
    %16 = arith.cmpi slt, %14, %15 : vector<8x8xi32>
    %17 = vector.extract_strided_slice %3 {offsets = [0, 0], sizes = [8, 8], strides = [1, 1]} : vector<8x32xf32> to vector<8x8xf32>
    %18 = vector.extract_strided_slice %7 {offsets = [0, 0], sizes = [8, 8], strides = [1, 1]} : vector<8x32xf32> to vector<8x8xf32>
    %19 = vector.extract_strided_slice %11 {offsets = [0, 0], sizes = [8, 8], strides = [1, 1]} : vector<8x32xf32> to vector<8x8xf32>
    %cst_16 = arith.constant dense<0.000000e+00> : vector<8x8xf32>
    %20 = tpu.matmul %17, %18, %cst_16 {dimension_numbers = #tpu.dot_dimension_numbers<[1], [1], [0], [0], [0, 0, 1, 0], [], []>} : vector<8x8xf32>, vector<8x8xf32>, vector<8x8xf32> -> vector<8x8xf32>
    %cst_17 = arith.constant 0.353553385 : f32
    %21 = vector.broadcast %cst_17 : f32 to vector<8x8xf32>
    %22 = arith.mulf %20, %21 : vector<8x8xf32>
    %cst_18 = arith.constant -1.000000e+06 : f32
    %23 = vector.broadcast %cst_18 : f32 to vector<8x8xf32>
    %24 = arith.select %16, %22, %23 : vector<8x8xi1>, vector<8x8xf32>
    %cst_19 = arith.constant dense<0xFF800000> : vector<8xf32>
    %25 = vector.multi_reduction <maximumf>, %24, %cst_19 [1] : vector<8x8xf32> to vector<8xf32>
    %26 = vector.shape_cast %25 : vector<8xf32> to vector<8x1xf32>
    %27 = vector.broadcast %26 : vector<8x1xf32> to vector<8x8xf32>
    %28 = arith.subf %24, %27 : vector<8x8xf32>
    %29 = math.exp %28 : vector<8x8xf32>
    %cst_20 = arith.constant dense<0.000000e+00> : vector<8xf32>
    %30 = vector.multi_reduction <add>, %29, %cst_20 [1] : vector<8x8xf32> to vector<8xf32>
    %31 = vector.shape_cast %30 : vector<8xf32> to vector<8x1xf32>
    %32 = tpu.reciprocal %31 {approx = true} : vector<8x1xf32> -> vector<8x1xf32>
    %33 = vector.broadcast %32 : vector<8x1xf32> to vector<8x8xf32>
    %34 = arith.mulf %29, %33 : vector<8x8xf32>
    %cst_21 = arith.constant dense<0.000000e+00> : vector<8x8xf32>
    %35 = tpu.matmul %34, %19, %cst_21 {dimension_numbers = #tpu.dot_dimension_numbers<[1], [0], [0], [1], [0, 0, 1, 1], [], []>} : vector<8x8xf32>, vector<8x8xf32>, vector<8x8xf32> -> vector<8x8xf32>
    %36 = vector.extract_strided_slice %3 {offsets = [0, 8], sizes = [8, 8], strides = [1, 1]} : vector<8x32xf32> to vector<8x8xf32>
    %37 = vector.extract_strided_slice %7 {offsets = [0, 8], sizes = [8, 8], strides = [1, 1]} : vector<8x32xf32> to vector<8x8xf32>
    %38 = vector.extract_strided_slice %11 {offsets = [0, 8], sizes = [8, 8], strides = [1, 1]} : vector<8x32xf32> to vector<8x8xf32>
    %cst_22 = arith.constant dense<0.000000e+00> : vector<8x8xf32>
    %39 = tpu.matmul %36, %37, %cst_22 {dimension_numbers = #tpu.dot_dimension_numbers<[1], [1], [0], [0], [0, 0, 1, 0], [], []>} : vector<8x8xf32>, vector<8x8xf32>, vector<8x8xf32> -> vector<8x8xf32>
    %cst_23 = arith.constant 0.353553385 : f32
    %40 = vector.broadcast %cst_23 : f32 to vector<8x8xf32>
    %41 = arith.mulf %39, %40 : vector<8x8xf32>
    %cst_24 = arith.constant -1.000000e+06 : f32
    %42 = vector.broadcast %cst_24 : f32 to vector<8x8xf32>
    %43 = arith.select %16, %41, %42 : vector<8x8xi1>, vector<8x8xf32>
    %cst_25 = arith.constant dense<0xFF800000> : vector<8xf32>
    %44 = vector.multi_reduction <maximumf>, %43, %cst_25 [1] : vector<8x8xf32> to vector<8xf32>
    %45 = vector.shape_cast %44 : vector<8xf32> to vector<8x1xf32>
    %46 = vector.broadcast %45 : vector<8x1xf32> to vector<8x8xf32>
    %47 = arith.subf %43, %46 : vector<8x8xf32>
    %48 = math.exp %47 : vector<8x8xf32>
    %cst_26 = arith.constant dense<0.000000e+00> : vector<8xf32>
    %49 = vector.multi_reduction <add>, %48, %cst_26 [1] : vector<8x8xf32> to vector<8xf32>
    %50 = vector.shape_cast %49 : vector<8xf32> to vector<8x1xf32>
    %51 = tpu.reciprocal %50 {approx = true} : vector<8x1xf32> -> vector<8x1xf32>
    %52 = vector.broadcast %51 : vector<8x1xf32> to vector<8x8xf32>
    %53 = arith.mulf %48, %52 : vector<8x8xf32>
    %cst_27 = arith.constant dense<0.000000e+00> : vector<8x8xf32>
    %54 = tpu.matmul %53, %38, %cst_27 {dimension_numbers = #tpu.dot_dimension_numbers<[1], [0], [0], [1], [0, 0, 1, 1], [], []>} : vector<8x8xf32>, vector<8x8xf32>, vector<8x8xf32> -> vector<8x8xf32>
    %55 = vector.extract_strided_slice %3 {offsets = [0, 16], sizes = [8, 8], strides = [1, 1]} : vector<8x32xf32> to vector<8x8xf32>
    %56 = vector.extract_strided_slice %7 {offsets = [0, 16], sizes = [8, 8], strides = [1, 1]} : vector<8x32xf32> to vector<8x8xf32>
    %57 = vector.extract_strided_slice %11 {offsets = [0, 16], sizes = [8, 8], strides = [1, 1]} : vector<8x32xf32> to vector<8x8xf32>
    %cst_28 = arith.constant dense<0.000000e+00> : vector<8x8xf32>
    %58 = tpu.matmul %55, %56, %cst_28 {dimension_numbers = #tpu.dot_dimension_numbers<[1], [1], [0], [0], [0, 0, 1, 0], [], []>} : vector<8x8xf32>, vector<8x8xf32>, vector<8x8xf32> -> vector<8x8xf32>
    %cst_29 = arith.constant 0.353553385 : f32
    %59 = vector.broadcast %cst_29 : f32 to vector<8x8xf32>
    %60 = arith.mulf %58, %59 : vector<8x8xf32>
    %cst_30 = arith.constant -1.000000e+06 : f32
    %61 = vector.broadcast %cst_30 : f32 to vector<8x8xf32>
    %62 = arith.select %16, %60, %61 : vector<8x8xi1>, vector<8x8xf32>
    %cst_31 = arith.constant dense<0xFF800000> : vector<8xf32>
    %63 = vector.multi_reduction <maximumf>, %62, %cst_31 [1] : vector<8x8xf32> to vector<8xf32>
    %64 = vector.shape_cast %63 : vector<8xf32> to vector<8x1xf32>
    %65 = vector.broadcast %64 : vector<8x1xf32> to vector<8x8xf32>
    %66 = arith.subf %62, %65 : vector<8x8xf32>
    %67 = math.exp %66 : vector<8x8xf32>
    %cst_32 = arith.constant dense<0.000000e+00> : vector<8xf32>
    %68 = vector.multi_reduction <add>, %67, %cst_32 [1] : vector<8x8xf32> to vector<8xf32>
    %69 = vector.shape_cast %68 : vector<8xf32> to vector<8x1xf32>
    %70 = tpu.reciprocal %69 {approx = true} : vector<8x1xf32> -> vector<8x1xf32>
    %71 = vector.broadcast %70 : vector<8x1xf32> to vector<8x8xf32>
    %72 = arith.mulf %67, %71 : vector<8x8xf32>
    %cst_33 = arith.constant dense<0.000000e+00> : vector<8x8xf32>
    %73 = tpu.matmul %72, %57, %cst_33 {dimension_numbers = #tpu.dot_dimension_numbers<[1], [0], [0], [1], [0, 0, 1, 1], [], []>} : vector<8x8xf32>, vector<8x8xf32>, vector<8x8xf32> -> vector<8x8xf32>
    %74 = vector.extract_strided_slice %3 {offsets = [0, 24], sizes = [8, 8], strides = [1, 1]} : vector<8x32xf32> to vector<8x8xf32>
    %75 = vector.extract_strided_slice %7 {offsets = [0, 24], sizes = [8, 8], strides = [1, 1]} : vector<8x32xf32> to vector<8x8xf32>
    %76 = vector.extract_strided_slice %11 {offsets = [0, 24], sizes = [8, 8], strides = [1, 1]} : vector<8x32xf32> to vector<8x8xf32>
    %cst_34 = arith.constant dense<0.000000e+00> : vector<8x8xf32>
    %77 = tpu.matmul %74, %75, %cst_34 {dimension_numbers = #tpu.dot_dimension_numbers<[1], [1], [0], [0], [0, 0, 1, 0], [], []>} : vector<8x8xf32>, vector<8x8xf32>, vector<8x8xf32> -> vector<8x8xf32>
    %cst_35 = arith.constant 0.353553385 : f32
    %78 = vector.broadcast %cst_35 : f32 to vector<8x8xf32>
    %79 = arith.mulf %77, %78 : vector<8x8xf32>
    %cst_36 = arith.constant -1.000000e+06 : f32
    %80 = vector.broadcast %cst_36 : f32 to vector<8x8xf32>
    %81 = arith.select %16, %79, %80 : vector<8x8xi1>, vector<8x8xf32>
    %cst_37 = arith.constant dense<0xFF800000> : vector<8xf32>
    %82 = vector.multi_reduction <maximumf>, %81, %cst_37 [1] : vector<8x8xf32> to vector<8xf32>
    %83 = vector.shape_cast %82 : vector<8xf32> to vector<8x1xf32>
    %84 = vector.broadcast %83 : vector<8x1xf32> to vector<8x8xf32>
    %85 = arith.subf %81, %84 : vector<8x8xf32>
    %86 = math.exp %85 : vector<8x8xf32>
    %cst_38 = arith.constant dense<0.000000e+00> : vector<8xf32>
    %87 = vector.multi_reduction <add>, %86, %cst_38 [1] : vector<8x8xf32> to vector<8xf32>
    %88 = vector.shape_cast %87 : vector<8xf32> to vector<8x1xf32>
    %89 = tpu.reciprocal %88 {approx = true} : vector<8x1xf32> -> vector<8x1xf32>
    %90 = vector.broadcast %89 : vector<8x1xf32> to vector<8x8xf32>
    %91 = arith.mulf %86, %90 : vector<8x8xf32>
    %cst_39 = arith.constant dense<0.000000e+00> : vector<8x8xf32>
    %92 = tpu.matmul %91, %76, %cst_39 {dimension_numbers = #tpu.dot_dimension_numbers<[1], [0], [0], [1], [0, 0, 1, 1], [], []>} : vector<8x8xf32>, vector<8x8xf32>, vector<8x8xf32> -> vector<8x8xf32>
    %93 = tpu.concatenate %35, %54, %73, %92 in 1 : vector<8x8xf32>, vector<8x8xf32>, vector<8x8xf32>, vector<8x8xf32> -> vector<8x32xf32>
    %c0_40 = arith.constant 0 : index
    %c0_41 = arith.constant 0 : index
    %94 = vector.load %arg8[%c0_40, %c0_41] : memref<32x32xf32, #tpu.memory_space<vmem>>, vector<32x32xf32>
    %cst_42 = arith.constant dense<0.000000e+00> : vector<8x32xf32>
    %95 = tpu.matmul %93, %94, %cst_42 {dimension_numbers = #tpu.dot_dimension_numbers<[1], [0], [0], [1], [0, 0, 1, 1], [], []>} : vector<8x32xf32>, vector<32x32xf32>, vector<8x32xf32> -> vector<8x32xf32>
    %c0_43 = arith.constant 0 : index
    %c0_44 = arith.constant 0 : index
    %c0_45 = arith.constant 0 : index
    %96 = vector.load %arg9[%c0_43, %c0_44, %c0_45] : memref<1x8x32xf32, #tpu.memory_space<vmem>>, vector<1x8x32xf32>
    %97 = vector.shape_cast %96 : vector<1x8x32xf32> to vector<8x32xf32>
    %98 = vector.shape_cast %95 : vector<8x32xf32> to vector<1x8x32xf32>
    tpu.vector_store %arg9[%c0_43, %c0_44, %c0_45], %98 {strides = array<i32>} : memref<1x8x32xf32, #tpu.memory_space<vmem>>, vector<1x8x32xf32>,
    return
  }
  func.func @transform_0(%arg0: i32, %arg1: memref<2xi32, #tpu.memory_space<smem>>) -> (i32, i32, i32) {
    %c0_i32 = arith.constant 0 : i32
    %c0_i32_0 = arith.constant 0 : i32
    %c0_i32_1 = arith.constant 0 : i32
    return %arg0, %c0_i32, %c0_i32_0 : i32, i32, i32
  }
  func.func @transform_1(%arg0: i32, %arg1: memref<2xi32, #tpu.memory_space<smem>>) -> (i32, i32, i32) {
    %c0_i32 = arith.constant 0 : i32
    %c0_i32_0 = arith.constant 0 : i32
    %c0_i32_1 = arith.constant 0 : i32
    return %arg0, %c0_i32, %c0_i32_0 : i32, i32, i32
  }
  func.func @transform_2(%arg0: i32, %arg1: memref<2xi32, #tpu.memory_space<smem>>) -> (i32, i32, i32) {
    %c0_i32 = arith.constant 0 : i32
    %c0_i32_0 = arith.constant 0 : i32
    %c0_i32_1 = arith.constant 0 : i32
    return %arg0, %c0_i32, %c0_i32_0 : i32, i32, i32
  }
  func.func @transform_3(%arg0: i32, %arg1: memref<2xi32, #tpu.memory_space<smem>>) -> (i32, i32) {
    %c0_i32 = arith.constant 0 : i32
    %c0_i32_0 = arith.constant 0 : i32
    %c0_i32_1 = arith.constant 0 : i32
    return %c0_i32, %c0_i32_0 : i32, i32
  }
  func.func @transform_4(%arg0: i32, %arg1: memref<2xi32, #tpu.memory_space<smem>>) -> (i32, i32) {
    %c0_i32 = arith.constant 0 : i32
    %c0_i32_0 = arith.constant 0 : i32
    %c0_i32_1 = arith.constant 0 : i32
    return %c0_i32, %c0_i32_0 : i32, i32
  }
  func.func @transform_5(%arg0: i32, %arg1: memref<2xi32, #tpu.memory_space<smem>>) -> (i32, i32) {
    %c0_i32 = arith.constant 0 : i32
    %c0_i32_0 = arith.constant 0 : i32
    %c0_i32_1 = arith.constant 0 : i32
    return %c0_i32, %c0_i32_0 : i32, i32
  }
  func.func @transform_6(%arg0: i32, %arg1: memref<2xi32, #tpu.memory_space<smem>>) -> (i32, i32) {
    %c0_i32 = arith.constant 0 : i32
    %c0_i32_0 = arith.constant 0 : i32
    %c0_i32_1 = arith.constant 0 : i32
    return %c0_i32, %c0_i32_0 : i32, i32
  }
  func.func @transform_7(%arg0: i32, %arg1: memref<2xi32, #tpu.memory_space<smem>>) -> (i32, i32, i32) {
    %c0_i32 = arith.constant 0 : i32
    %c0_i32_0 = arith.constant 0 : i32
    %c0_i32_1 = arith.constant 0 : i32
    return %arg0, %c0_i32, %c0_i32_0 : i32, i32, i32
  }
}

</mosaic_0001>

<llo_original>
// kernel: multi_head_attention.1
$region0: #{multi_head_attention.1}
  #allocation0 [shape = 'u32[]', space=smem, size = 0x4, offset = 0x4, fixed_abs, tag = 'smem constant byte address 0x4 - core index']
  #allocation1 [shape = 'u32[144,128]{1,0:T(1,128)}', space=vmem, size = 0x12000, scoped, tag = 'internal scratch']
  #allocation2 [shape = 's32[1]{0}', space=sflag, size = 0x4, scoped, tag = 'scoped memory for multi_head_attention.1']
  #allocation3 [shape = 'u8[512]{0}', space=smem, size = 0x200, scoped, tag = 'prefetched SMEM operand 0']
  %s0 = inlined_call_operand.vmem [shape: s32[2], index: 0, kind: input, shape index: {}]
  %s1 = inlined_call_operand.vmem [shape: f32[2,8,16], index: 1, kind: input, shape index: {}]
  %s2 = inlined_call_operand.vmem [shape: f32[2,8,16], index: 2, kind: input, shape index: {}]
  %s3 = inlined_call_operand.vmem [shape: f32[2,8,16], index: 3, kind: input, shape index: {}]
  %s4 = inlined_call_operand.vmem [shape: f32[16,32], index: 4, kind: input, shape index: {}]
  %s5 = inlined_call_operand.hbm [shape: f32[16,32], index: 5, kind: input, shape index: {}]
  %s6 = inlined_call_operand.vmem [shape: f32[16,32], index: 6, kind: input, shape index: {}]
  %s7 = inlined_call_operand.vmem [shape: f32[32,32], index: 7, kind: input, shape index: {}]
  %s8 = inlined_call_operand.hbm [shape: f32[2,8,32], index: 8, kind: output, shape index: {}]
  %s9 = sld [smem:[#allocation0]]
  $region65: #{multi_head_attention.1} parent=0
    _
  %s11 = ssub.s32 1, %s9
  %s12 = scalar_select 0, %s11, %s9
  %s13 = sshll.u32 %s0, 4
  %s14 = int_to_ptr.vmem [resolvable:$true] %s13
  %16 = dma.vmem_to_smem %s14, 16, [#allocation3], [#allocation2]
  %17 = dma.done [#allocation2], 16
  %18 = sfence
  $region1: #{multi_head_attention.1} parent=0
    #allocation4 [shape = 'u8[8192]{0}', space=vmem, size = 0x2000, scoped, tag = 'input window, operand 5, single buffered']
    #allocation5 [shape = 's32[2]{0}', space=sflag, size = 0x8, scoped, tag = 'scoped memory for multi_head_attention.1']
    #allocation6 [shape = 's32[2]{0}', space=sflag, size = 0x8, scoped, tag = 'scoped memory for multi_head_attention.1']
    #allocation7 [shape = 'u8[8192]{0}', space=vmem, size = 0x2000, scoped, tag = 'output window, operand 0']
    %19 = vsyncpa [#allocation5], 0
    %20 = vsyncpa [#allocation6], 0
    %s21 = scalar_lea.sflag [#allocation6], 1
    %22 = vsyncpa %s21, 0
    loop: start=0, step=1, limit=4
    $region2: #{multi_head_attention.1} parent=1 // loop_pre_header
      _
    $region3: #{multi_head_attention.1} parent=1 // loop_header
      %s24 = sphi 0, %s28
      %p25 = scmp.ge.s32.totalorder %s24, 4
      %s34 = sphi 0, %s36
      %s37 = sphi 0, %s34
      %s38 = sphi 0, %s37
      %s54 = sphi 0, %s38
      %s60 = sphi 0, %s62
      %s63 = sphi 0, %s60
      %s64 = sphi 0, %s63
      %s80 = sphi 0, %s64
      %s86 = sphi 0, %s88
      %s89 = sphi 0, %s86
      %s90 = sphi 0, %s89
      %s106 = sphi 0, %s90
      %s110 = sphi 0, %s110
      %s112 = sphi 0, %s110
      %s113 = sphi 0, %s112
      %s127 = sphi 0, %s113
      %s131 = sphi 0, %s131
      %s133 = sphi 0, %s131
      %s134 = sphi 0, %s133
      %s148 = sphi 0, %s134
      %s152 = sphi 0, %s152
      %s154 = sphi 0, %s152
      %s155 = sphi 0, %s154
      %s169 = sphi 0, %s155
      %s173 = sphi 0, %s173
      %s175 = sphi 0, %s173
      %s176 = sphi 0, %s175
      %s190 = sphi 0, %s176
      %s196 = sphi 0, %s198
      %s199 = sphi 0, %s196
      %s200 = sphi 0, %s199
      %s216 = sphi 0, %s200
    $region4: #{multi_head_attention.1} parent=1 // loop_header_branch
      %27 = sbr.rel (%p25) target = $region8
    $region5: #{multi_head_attention.1} parent=1 // loop_body
      %s29 = ssub.s32 %s24, 1
      %s30 = ssub.s32 %s24, 2
      %s31 = sadd.s32 %s24, 1
      %s32 = ssub.s32 %s24, %s31
      %p33 = scmp.eq.s32.totalorder %s32, 0
      %s35 = sadd.s32 %s34, 1
      %s36 = scalar_select %p33, %s34, %s35
      %p39 = pneg %p33
      %p40 = scmp.eq.s32.totalorder %s24, 1
      %p41 = por %p39, %p40
      %p42 = scmp.ne.s32.totalorder %s34, %s37
      %p43 = scmp.eq.s32.totalorder %s24, 0
      %p44 = por %p42, %p43
      %p45 = scmp.ne.s32.totalorder %s34, %s37
      %p46 = scmp.eq.s32.totalorder %s29, 1
      %p47 = por %p45, %p46
      %p48 = scmp.ne.s32.totalorder %s37, %s38
      %p49 = scmp.eq.s32.totalorder %s29, 0
      %p50 = por %p48, %p49
      %p51 = scmp.ne.s32.totalorder %s37, %s38
      %p52 = scmp.eq.s32.totalorder %s30, 1
      %p53 = por %p51, %p52
      %p55 = scmp.ne.s32.totalorder %s38, %s54
      %p56 = scmp.eq.s32.totalorder %s30, 0
      %p57 = por %p55, %p56
      %s58 = ssub.s32 %s24, %s31
      %p59 = scmp.eq.s32.totalorder %s58, 0
      %s61 = sadd.s32 %s60, 1
      %s62 = scalar_select %p59, %s60, %s61
      %p65 = pneg %p59
      %p66 = scmp.eq.s32.totalorder %s24, 1
      %p67 = por %p65, %p66
      %p68 = scmp.ne.s32.totalorder %s60, %s63
      %p69 = scmp.eq.s32.totalorder %s24, 0
      %p70 = por %p68, %p69
      %p71 = scmp.ne.s32.totalorder %s60, %s63
      %p72 = scmp.eq.s32.totalorder %s29, 1
      %p73 = por %p71, %p72
      %p74 = scmp.ne.s32.totalorder %s63, %s64
      %p75 = scmp.eq.s32.totalorder %s29, 0
      %p76 = por %p74, %p75
      %p77 = scmp.ne.s32.totalorder %s63, %s64
      %p78 = scmp.eq.s32.totalorder %s30, 1
      %p79 = por %p77, %p78
      %p81 = scmp.ne.s32.totalorder %s64, %s80
      %p82 = scmp.eq.s32.totalorder %s30, 0
      %p83 = por %p81, %p82
      %s84 = ssub.s32 %s24, %s31
      %p85 = scmp.eq.s32.totalorder %s84, 0
      %s87 = sadd.s32 %s86, 1
      %s88 = scalar_select %p85, %s86, %s87
      %p91 = pneg %p85
      %p92 = scmp.eq.s32.totalorder %s24, 1
      %p93 = por %p91, %p92
      %p94 = scmp.ne.s32.totalorder %s86, %s89
      %p95 = scmp.eq.s32.totalorder %s24, 0
      %p96 = por %p94, %p95
      %p97 = scmp.ne.s32.totalorder %s86, %s89
      %p98 = scmp.eq.s32.totalorder %s29, 1
      %p99 = por %p97, %p98
      %p100 = scmp.ne.s32.totalorder %s89, %s90
      %p101 = scmp.eq.s32.totalorder %s29, 0
      %p102 = por %p100, %p101
      %p103 = scmp.ne.s32.totalorder %s89, %s90
      %p104 = scmp.eq.s32.totalorder %s30, 1
      %p105 = por %p103, %p104
      %p107 = scmp.ne.s32.totalorder %s90, %s106
      %p108 = scmp.eq.s32.totalorder %s30, 0
      %p109 = por %p107, %p108
      %s111 = sadd.s32 %s110, 1
      %p114 = scmp.eq.s32.totalorder %s24, 1
      %p115 = scmp.ne.s32.totalorder %s110, %s112
      %p116 = scmp.eq.s32.totalorder %s24, 0
      %p117 = por %p115, %p116
      %p118 = scmp.ne.s32.totalorder %s110, %s112
      %p119 = scmp.eq.s32.totalorder %s29, 1
      %p120 = por %p118, %p119
      %p121 = scmp.ne.s32.totalorder %s112, %s113
      %p122 = scmp.eq.s32.totalorder %s29, 0
      %p123 = por %p121, %p122
      %p124 = scmp.ne.s32.totalorder %s112, %s113
      %p125 = scmp.eq.s32.totalorder %s30, 1
      %p126 = por %p124, %p125
      %p128 = scmp.ne.s32.totalorder %s113, %s127
      %p129 = scmp.eq.s32.totalorder %s30, 0
      %p130 = por %p128, %p129
      %s132 = sadd.s32 %s131, 1
      %p135 = scmp.eq.s32.totalorder %s24, 1
      %p136 = scmp.ne.s32.totalorder %s131, %s133
      %p137 = scmp.eq.s32.totalorder %s24, 0
      %p138 = por %p136, %p137
      %p139 = scmp.ne.s32.totalorder %s131, %s133
      %p140 = scmp.eq.s32.totalorder %s29, 1
      %p141 = por %p139, %p140
      %p142 = scmp.ne.s32.totalorder %s133, %s134
      %p143 = scmp.eq.s32.totalorder %s29, 0
      %p144 = por %p142, %p143
      %p145 = scmp.ne.s32.totalorder %s133, %s134
      %p146 = scmp.eq.s32.totalorder %s30, 1
      %p147 = por %p145, %p146
      %p149 = scmp.ne.s32.totalorder %s134, %s148
      %p150 = scmp.eq.s32.totalorder %s30, 0
      %p151 = por %p149, %p150
      %s153 = sadd.s32 %s152, 1
      %p156 = scmp.eq.s32.totalorder %s24, 1
      %p157 = scmp.ne.s32.totalorder %s152, %s154
      %p158 = scmp.eq.s32.totalorder %s24, 0
      %p159 = por %p157, %p158
      %p160 = scmp.ne.s32.totalorder %s152, %s154
      %p161 = scmp.eq.s32.totalorder %s29, 1
      %p162 = por %p160, %p161
      %p163 = scmp.ne.s32.totalorder %s154, %s155
      %p164 = scmp.eq.s32.totalorder %s29, 0
      %p165 = por %p163, %p164
      %p166 = scmp.ne.s32.totalorder %s154, %s155
      %p167 = scmp.eq.s32.totalorder %s30, 1
      %p168 = por %p166, %p167
      %p170 = scmp.ne.s32.totalorder %s155, %s169
      %p171 = scmp.eq.s32.totalorder %s30, 0
      %p172 = por %p170, %p171
      %s174 = sadd.s32 %s173, 1
      %p177 = scmp.eq.s32.totalorder %s24, 1
      %p178 = scmp.ne.s32.totalorder %s173, %s175
      %p179 = scmp.eq.s32.totalorder %s24, 0
      %p180 = por %p178, %p179
      %p181 = scmp.ne.s32.totalorder %s173, %s175
      %p182 = scmp.eq.s32.totalorder %s29, 1
      %p183 = por %p181, %p182
      %p184 = scmp.ne.s32.totalorder %s175, %s176
      %p185 = scmp.eq.s32.totalorder %s29, 0
      %p186 = por %p184, %p185
      %p187 = scmp.ne.s32.totalorder %s175, %s176
      %p188 = scmp.eq.s32.totalorder %s30, 1
      %p189 = por %p187, %p188
      %p191 = scmp.ne.s32.totalorder %s176, %s190
      %p192 = scmp.eq.s32.totalorder %s30, 0
      %p193 = por %p191, %p192
      %s194 = ssub.s32 %s24, %s31
      %p195 = scmp.eq.s32.totalorder %s194, 0
      %s197 = sadd.s32 %s196, 1
      %s198 = scalar_select %p195, %s196, %s197
      %p201 = pneg %p195
      %p202 = scmp.eq.s32.totalorder %s24, 1
      %p203 = por %p201, %p202
      %p204 = scmp.ne.s32.totalorder %s196, %s199
      %p205 = scmp.eq.s32.totalorder %s24, 0
      %p206 = por %p204, %p205
      %p207 = scmp.ne.s32.totalorder %s196, %s199
      %p208 = scmp.eq.s32.totalorder %s29, 1
      %p209 = por %p207, %p208
      %p210 = scmp.ne.s32.totalorder %s199, %s200
      %p211 = scmp.eq.s32.totalorder %s29, 0
      %p212 = por %p210, %p211
      %p213 = scmp.ne.s32.totalorder %s199, %s200
      %p214 = scmp.eq.s32.totalorder %s30, 1
      %p215 = por %p213, %p214
      %p217 = scmp.ne.s32.totalorder %s200, %s216
      %p218 = scmp.eq.s32.totalorder %s30, 0
      %p219 = por %p217, %p218
      %p220 = scmp.le.s32.totalorder 1, %s24
      %p221 = scmp.lt.s32.totalorder %s24, 3
      %p222 = pnand %p220, %p221
      %p223 = pneg %p222
      // Predicated region
      $region9: #{multi_head_attention.1} parent=5 // pred_check
        _
      $region10: #{multi_head_attention.1} parent=5 // pred_check_branch
        %225 = sbr.rel (%p222) target = $region12
      $region11: #{multi_head_attention.1} parent=5 // pred_region
        %s226 = ssub.s32 %s24, 1
        // Predicated region
        $region13: #{multi_head_attention.1} parent=11 // pred_check
          %p227 = pneg %p123
        $region14: #{multi_head_attention.1} parent=11 // pred_check_branch
          %229 = sbr.rel (%p227) target = $region16
        $region15: #{multi_head_attention.1} parent=11 // pred_region
          _
        $region16: #{multi_head_attention.1} parent=11 // pred_fallthru
          _
        // Predicated region
        $region17: #{multi_head_attention.1} parent=11 // pred_check
          %p230 = pneg %p144
        $region18: #{multi_head_attention.1} parent=11 // pred_check_branch
          %232 = sbr.rel (%p230) target = $region20
        $region19: #{multi_head_attention.1} parent=11 // pred_region
          %s234 = ssub.s32 256, 256
          %235 = vsyncadd [#allocation5], %s234
          %s236 = sshll.u32 [#allocation4], 4
          %s237 = int_to_ptr.vmem [resolvable:$true] %s236
          %242 = dma.hbm_to_vmem [thread:$0]  %s5, 256, %s237, [#allocation5], 128, 128, 8
        $region20: #{multi_head_attention.1} parent=11 // pred_fallthru
          _
        // Predicated region
        $region21: #{multi_head_attention.1} parent=11 // pred_check
          %p243 = pneg %p165
        $region22: #{multi_head_attention.1} parent=11 // pred_check_branch
          %245 = sbr.rel (%p243) target = $region24
        $region23: #{multi_head_attention.1} parent=11 // pred_region
          _
        $region24: #{multi_head_attention.1} parent=11 // pred_fallthru
          _
        // Predicated region
        $region25: #{multi_head_attention.1} parent=11 // pred_check
          %p246 = pneg %p186
        $region26: #{multi_head_attention.1} parent=11 // pred_check_branch
          %248 = sbr.rel (%p246) target = $region28
        $region27: #{multi_head_attention.1} parent=11 // pred_region
          _
        $region28: #{multi_head_attention.1} parent=11 // pred_fallthru
          _
      $region12: #{multi_head_attention.1} parent=5 // pred_fallthru
        _
      %p249 = scmp.lt.s32.totalorder %s24, 2
      // Predicated region
      $region29: #{multi_head_attention.1} parent=5 // pred_check
        %p250 = pneg %p249
      $region30: #{multi_head_attention.1} parent=5 // pred_check_branch
        %252 = sbr.rel (%p250) target = $region32
      $region31: #{multi_head_attention.1} parent=5 // pred_region
        // Predicated region
        $region33: #{multi_head_attention.1} parent=31 // pred_check
          %p253 = pneg %p44
        $region34: #{multi_head_attention.1} parent=31 // pred_check_branch
          %255 = sbr.rel (%p253) target = $region36
        $region35: #{multi_head_attention.1} parent=31 // pred_region
          %p256 = scmp.lt.s32.totalorder %s24, 1
          %s257 = scalar_select %p256, %s24, 1
          %s258 = smul.addr %s257, 8
          %s259 = scalar_lea.vmem %s1, %s258
        $region36: #{multi_head_attention.1} parent=31 // pred_fallthru
          _
        // Predicated region
        $region37: #{multi_head_attention.1} parent=31 // pred_check
          %p260 = pneg %p70
        $region38: #{multi_head_attention.1} parent=31 // pred_check_branch
          %262 = sbr.rel (%p260) target = $region40
        $region39: #{multi_head_attention.1} parent=31 // pred_region
          %p263 = scmp.lt.s32.totalorder %s24, 1
          %s264 = scalar_select %p263, %s24, 1
          %s265 = smul.addr %s264, 8
          %s266 = scalar_lea.vmem %s2, %s265
        $region40: #{multi_head_attention.1} parent=31 // pred_fallthru
          _
        // Predicated region
        $region41: #{multi_head_attention.1} parent=31 // pred_check
          %p267 = pneg %p96
        $region42: #{multi_head_attention.1} parent=31 // pred_check_branch
          %269 = sbr.rel (%p267) target = $region44
        $region43: #{multi_head_attention.1} parent=31 // pred_region
          %p270 = scmp.lt.s32.totalorder %s24, 1
          %s271 = scalar_select %p270, %s24, 1
          %s272 = smul.addr %s271, 8
          %s273 = scalar_lea.vmem %s3, %s272
        $region44: #{multi_head_attention.1} parent=31 // pred_fallthru
          _
      $region32: #{multi_head_attention.1} parent=5 // pred_fallthru
        _
      %p274 = scmp.le.s32.totalorder 1, %s24
      %p275 = scmp.lt.s32.totalorder %s24, 3
      %p276 = pnand %p274, %p275
      %p277 = pneg %p276
      // Predicated region
      $region45: #{multi_head_attention.1} parent=5 // pred_check
        _
      $region46: #{multi_head_attention.1} parent=5 // pred_check_branch
        %279 = sbr.rel (%p276) target = $region48
      $region47: #{multi_head_attention.1} parent=5 // pred_region
        %s280 = ssub.s32 %s24, 1
        // Predicated region
        $region49: #{multi_head_attention.1} parent=47 // pred_check
          %p281 = pneg %p144
        $region50: #{multi_head_attention.1} parent=47 // pred_check_branch
          %283 = sbr.rel (%p281) target = $region52
        $region51: #{multi_head_attention.1} parent=47 // pred_region
          %284 = dma.done [#allocation5], 256
        $region52: #{multi_head_attention.1} parent=47 // pred_fallthru
          _
        %p285 = scmp.lt.s32.totalorder %s29, 1
        %s286 = scalar_select %p285, %s29, 1
        %s287 = smul.addr %s286, 8
        %s288 = scalar_lea.vmem %s1, %s287
        %p289 = pneg %p50
        %p290 = pneg %p47
        %p291 = scmp.lt.s32.totalorder %s29, 1
        %s292 = scalar_select %p291, %s29, 1
        %s293 = smul.addr %s292, 8
        %s294 = scalar_lea.vmem %s2, %s293
        %p295 = pneg %p76
        %p296 = pneg %p73
        %p297 = scmp.lt.s32.totalorder %s29, 1
        %s298 = scalar_select %p297, %s29, 1
        %s299 = smul.addr %s298, 8
        %s300 = scalar_lea.vmem %s3, %s299
        %p301 = pneg %p102
        %p302 = pneg %p99
        %p303 = pneg %p123
        %p304 = pneg %p120
        %p305 = pneg %p144
        %p306 = pneg %p141
        %p307 = pneg %p165
        %p308 = pneg %p162
        %p309 = pneg %p186
        %p310 = pneg %p183
        %p311 = pneg %p212
        %p312 = pneg %p209
        %s313 = sand.u32 %s199, 1
        %s314 = scalar_lea.sflag [#allocation6], %s313
        %s315 = sand.u32 %s199, 1
        %s316 = smul.addr %s315, 8
        %s317 = scalar_lea.vmem [#allocation7], %s316
        %p318 = scmp.lt.s32.totalorder %s29, 1
        %s319 = scalar_select %p318, %s29, 1
        %s320 = smul.addr %s319, 8
        %s321 = scalar_lea.vmem %s1, %s320
        %p322 = scmp.lt.s32.totalorder %s29, 1
        %s323 = scalar_select %p322, %s29, 1
        %s324 = smul.addr %s323, 8
        %s325 = scalar_lea.vmem %s2, %s324
        %p326 = scmp.lt.s32.totalorder %s29, 1
        %s327 = scalar_select %p326, %s29, 1
        %s328 = smul.addr %s327, 8
        %s329 = scalar_lea.vmem %s3, %s328
        %v330 = vld [vmem:[%s321] sm:$0xff]
        %v331 = vld [vmem:[%s4] sm:$0xff]
        %v332 = vld [vmem:[%s4 + $0x8] sm:$0xff]
        %vm333 = vcmask 130048
        %v335 = vsel %vm333, %v330, 0
        %337 = vmatprep.subr.mxu0 0.0
        %338 = vmatpush1.msra.mxu0 %v331
        %339 = vmatprep.subr.mxu0 0.0
        %340 = vmatpush1.msra.mxu0 %v332
        %341 = vmatprep.subr.mxu0 0.0
        %342 = vmatpush1.msra.mxu0 0.0
        %343 = vmatprep.subr.mxu0 0.0
        %344 = vmatpush1.msra.mxu0 0.0
        %345 = vmatprep.subr.mxu0 0.0
        %346 = vmatpush1.msra.mxu0 0.0
        %347 = vmatprep.subr.mxu0 0.0
        %348 = vmatpush1.msra.mxu0 0.0
        %349 = vmatprep.subr.mxu0 0.0
        %350 = vmatpush1.msra.mxu0 0.0
        %351 = vmatprep.subr.mxu0 0.0
        %352 = vmatpush1.msra.mxu0 0.0
        %353 = vmatprep.subr.mxu0 0.0
        %354 = vmatpush1.msra.mxu0 0.0
        %355 = vmatprep.subr.mxu0 0.0
        %356 = vmatpush1.msra.mxu0 0.0
        %357 = vmatprep.subr.mxu0 0.0
        %358 = vmatpush1.msra.mxu0 0.0
        %359 = vmatprep.subr.mxu0 0.0
        %360 = vmatpush1.msra.mxu0 0.0
        %361 = vmatprep.subr.mxu0 0.0
        %362 = vmatpush1.msra.mxu0 0.0
        %363 = vmatprep.subr.mxu0 0.0
        %364 = vmatpush1.msra.mxu0 0.0
        %365 = vmatprep.subr.mxu0 0.0
        %366 = vmatpush1.msra.mxu0 0.0
        %367 = vmatprep.subr.mxu0 0.0
        %368 = vmatpush1.msra.mxu0 0.0
        %369 = vmatprep.subr.mxu0 0.0
        %370 = vmatpush1.msra.mxu0 0.0
        %371 = vmatprep.subr.mxu0 0.0
        %372 = vmatpush1.msra.mxu0 0.0
        %373 = vmatprep.subr.mxu0 0.0
        %374 = vmatpush1.msra.mxu0 0.0
        %375 = vmatprep.subr.mxu0 0.0
        %376 = vmatpush1.msra.mxu0 0.0
        %377 = vmatprep.subr.mxu0 0.0
        %378 = vmatpush1.msra.mxu0 0.0
        %379 = vmatprep.subr.mxu0 0.0
        %380 = vmatpush1.msra.mxu0 0.0
        %381 = vmatprep.subr.mxu0 0.0
        %382 = vmatpush1.msra.mxu0 0.0
        %383 = vmatprep.subr.mxu0 0.0
        %384 = vmatpush1.msra.mxu0 0.0
        %385 = vmatprep.subr.mxu0 0.0
        %386 = vmatpush1.msra.mxu0 0.0
        %387 = vmatprep.subr.mxu0 0.0
        %388 = vmatpush1.msra.mxu0 0.0
        %389 = vmatprep.subr.mxu0 0.0
        %390 = vmatpush1.msra.mxu0 0.0
        %391 = vmatprep.subr.mxu0 0.0
        %392 = vmatpush1.msra.mxu0 0.0
        %393 = vmatprep.subr.mxu0 0.0
        %394 = vmatpush1.msra.mxu0 0.0
        %395 = vmatprep.subr.mxu0 0.0
        %396 = vmatpush1.msra.mxu0 0.0
        %397 = vmatprep.subr.mxu0 0.0
        %398 = vmatpush1.msra.mxu0 0.0
        %399 = vmatprep.subr.mxu0 0.0
        %400 = vmatpush1.msra.mxu0 0.0
        %401 = vmatprep.mubr.f32.mxu0 0.0
        %402 = vmatmul.mubr.f32.gmra.mrb[0].mxu0 %v335
        %v403 = vpop.f32.mrb[0].mxu0
        %v404 = vadd.f32 0.0, %v403
        %v405 = vpop.f32.mrb[0].mxu0
        %406 = vdwg.mxu0
        %v407 = vld [vmem:[%s325] sm:$0xff]
        %v408 = vld [vmem:[#allocation4] sm:$0xff]
        %v409 = vld [vmem:[#allocation4 + $0x8] sm:$0xff]
        %v411 = vsel %vm333, %v407, 0
        %413 = vmatprep.subr.mxu0 0.0
        %414 = vmatpush1.msra.mxu0 %v408
        %415 = vmatprep.subr.mxu0 0.0
        %416 = vmatpush1.msra.mxu0 %v409
        %417 = vmatprep.subr.mxu0 0.0
        %418 = vmatpush1.msra.mxu0 0.0
        %419 = vmatprep.subr.mxu0 0.0
        %420 = vmatpush1.msra.mxu0 0.0
        %421 = vmatprep.subr.mxu0 0.0
        %422 = vmatpush1.msra.mxu0 0.0
        %423 = vmatprep.subr.mxu0 0.0
        %424 = vmatpush1.msra.mxu0 0.0
        %425 = vmatprep.subr.mxu0 0.0
        %426 = vmatpush1.msra.mxu0 0.0
        %427 = vmatprep.subr.mxu0 0.0
        %428 = vmatpush1.msra.mxu0 0.0
        %429 = vmatprep.subr.mxu0 0.0
        %430 = vmatpush1.msra.mxu0 0.0
        %431 = vmatprep.subr.mxu0 0.0
        %432 = vmatpush1.msra.mxu0 0.0
        %433 = vmatprep.subr.mxu0 0.0
        %434 = vmatpush1.msra.mxu0 0.0
        %435 = vmatprep.subr.mxu0 0.0
        %436 = vmatpush1.msra.mxu0 0.0
        %437 = vmatprep.subr.mxu0 0.0
        %438 = vmatpush1.msra.mxu0 0.0
        %439 = vmatprep.subr.mxu0 0.0
        %440 = vmatpush1.msra.mxu0 0.0
        %441 = vmatprep.subr.mxu0 0.0
        %442 = vmatpush1.msra.mxu0 0.0
        %443 = vmatprep.subr.mxu0 0.0
        %444 = vmatpush1.msra.mxu0 0.0
        %445 = vmatprep.subr.mxu0 0.0
        %446 = vmatpush1.msra.mxu0 0.0
        %447 = vmatprep.subr.mxu0 0.0
        %448 = vmatpush1.msra.mxu0 0.0
        %449 = vmatprep.subr.mxu0 0.0
        %450 = vmatpush1.msra.mxu0 0.0
        %451 = vmatprep.subr.mxu0 0.0
        %452 = vmatpush1.msra.mxu0 0.0
        %453 = vmatprep.subr.mxu0 0.0
        %454 = vmatpush1.msra.mxu0 0.0
        %455 = vmatprep.subr.mxu0 0.0
        %456 = vmatpush1.msra.mxu0 0.0
        %457 = vmatprep.subr.mxu0 0.0
        %458 = vmatpush1.msra.mxu0 0.0
        %459 = vmatprep.subr.mxu0 0.0
        %460 = vmatpush1.msra.mxu0 0.0
        %461 = vmatprep.subr.mxu0 0.0
        %462 = vmatpush1.msra.mxu0 0.0
        %463 = vmatprep.subr.mxu0 0.0
        %464 = vmatpush1.msra.mxu0 0.0
        %465 = vmatprep.subr.mxu0 0.0
        %466 = vmatpush1.msra.mxu0 0.0
        %467 = vmatprep.subr.mxu0 0.0
        %468 = vmatpush1.msra.mxu0 0.0
        %469 = vmatprep.subr.mxu0 0.0
        %470 = vmatpush1.msra.mxu0 0.0
        %471 = vmatprep.subr.mxu0 0.0
        %472 = vmatpush1.msra.mxu0 0.0
        %473 = vmatprep.subr.mxu0 0.0
        %474 = vmatpush1.msra.mxu0 0.0
        %475 = vmatprep.subr.mxu0 0.0
        %476 = vmatpush1.msra.mxu0 0.0
        %477 = vmatprep.mubr.f32.mxu0 0.0
        %478 = vmatmul.mubr.f32.gmra.mrb[0].mxu0 %v411
        %v479 = vpop.f32.mrb[0].mxu0
        %v480 = vadd.f32 0.0, %v479
        %v481 = vpop.f32.mrb[0].mxu0
        %482 = vdwg.mxu0
        %v483 = vld [vmem:[%s329] sm:$0xff]
        %v484 = vld [vmem:[%s6] sm:$0xff]
        %v485 = vld [vmem:[%s6 + $0x8] sm:$0xff]
        %v487 = vsel %vm333, %v483, 0
        %489 = vmatprep.subr.mxu0 0.0
        %490 = vmatpush1.msra.mxu0 %v484
        %491 = vmatprep.subr.mxu0 0.0
        %492 = vmatpush1.msra.mxu0 %v485
        %493 = vmatprep.subr.mxu0 0.0
        %494 = vmatpush1.msra.mxu0 0.0
        %495 = vmatprep.subr.mxu0 0.0
        %496 = vmatpush1.msra.mxu0 0.0
        %497 = vmatprep.subr.mxu0 0.0
        %498 = vmatpush1.msra.mxu0 0.0
        %499 = vmatprep.subr.mxu0 0.0
        %500 = vmatpush1.msra.mxu0 0.0
        %501 = vmatprep.subr.mxu0 0.0
        %502 = vmatpush1.msra.mxu0 0.0
        %503 = vmatprep.subr.mxu0 0.0
        %504 = vmatpush1.msra.mxu0 0.0
        %505 = vmatprep.subr.mxu0 0.0
        %506 = vmatpush1.msra.mxu0 0.0
        %507 = vmatprep.subr.mxu0 0.0
        %508 = vmatpush1.msra.mxu0 0.0
        %509 = vmatprep.subr.mxu0 0.0
        %510 = vmatpush1.msra.mxu0 0.0
        %511 = vmatprep.subr.mxu0 0.0
        %512 = vmatpush1.msra.mxu0 0.0
        %513 = vmatprep.subr.mxu0 0.0
        %514 = vmatpush1.msra.mxu0 0.0
        %515 = vmatprep.subr.mxu0 0.0
        %516 = vmatpush1.msra.mxu0 0.0
        %517 = vmatprep.subr.mxu0 0.0
        %518 = vmatpush1.msra.mxu0 0.0
        %519 = vmatprep.subr.mxu0 0.0
        %520 = vmatpush1.msra.mxu0 0.0
        %521 = vmatprep.subr.mxu0 0.0
        %522 = vmatpush1.msra.mxu0 0.0
        %523 = vmatprep.subr.mxu0 0.0
        %524 = vmatpush1.msra.mxu0 0.0
        %525 = vmatprep.subr.mxu0 0.0
        %526 = vmatpush1.msra.mxu0 0.0
        %527 = vmatprep.subr.mxu0 0.0
        %528 = vmatpush1.msra.mxu0 0.0
        %529 = vmatprep.subr.mxu0 0.0
        %530 = vmatpush1.msra.mxu0 0.0
        %531 = vmatprep.subr.mxu0 0.0
        %532 = vmatpush1.msra.mxu0 0.0
        %533 = vmatprep.subr.mxu0 0.0
        %534 = vmatpush1.msra.mxu0 0.0
        %535 = vmatprep.subr.mxu0 0.0
        %536 = vmatpush1.msra.mxu0 0.0
        %537 = vmatprep.subr.mxu0 0.0
        %538 = vmatpush1.msra.mxu0 0.0
        %539 = vmatprep.subr.mxu0 0.0
        %540 = vmatpush1.msra.mxu0 0.0
        %541 = vmatprep.subr.mxu0 0.0
        %542 = vmatpush1.msra.mxu0 0.0
        %543 = vmatprep.subr.mxu0 0.0
        %544 = vmatpush1.msra.mxu0 0.0
        %545 = vmatprep.subr.mxu0 0.0
        %546 = vmatpush1.msra.mxu0 0.0
        %547 = vmatprep.subr.mxu0 0.0
        %548 = vmatpush1.msra.mxu0 0.0
        %549 = vmatprep.subr.mxu0 0.0
        %550 = vmatpush1.msra.mxu0 0.0
        %551 = vmatprep.subr.mxu0 0.0
        %552 = vmatpush1.msra.mxu0 0.0
        %553 = vmatprep.mubr.f32.mxu0 0.0
        %554 = vmatmul.mubr.f32.gmra.mrb[0].mxu0 %v487
        %v555 = vpop.f32.mrb[0].mxu0
        %v556 = vadd.f32 0.0, %v555
        %v557 = vpop.f32.mrb[0].mxu0
        %558 = vdwg.mxu0
        %s559 = sld [smem:[#allocation3 + %s29]]
        %v560 = vlaneseq
        %v561 = vand.u32 %v560, 127
        %v562 = vstv %s559
        %vm563 = vcmp.lt.s32.totalorder %v561, %v562
        %vm564 = vcmask 64512
        %v566 = vsel %vm564, %v404, 0
        %v569 = vsel %vm564, %v480, 0
        %571 = vmatprep.subr.mxu0 0.0
        %572 = vmatpush1.xpose.msra.mxu0 %v569
        %573 = vmatprep.subr.mxu0 0.0
        %574 = vmatpush1.xpose.msra.mxu0 0.0
        %575 = vmatprep.subr.mxu0 0.0
        %576 = vmatpush1.xpose.msra.mxu0 0.0
        %577 = vmatprep.subr.mxu0 0.0
        %578 = vmatpush1.xpose.msra.mxu0 0.0
        %579 = vmatprep.subr.mxu0 0.0
        %580 = vmatpush1.xpose.msra.mxu0 0.0
        %581 = vmatprep.subr.mxu0 0.0
        %582 = vmatpush1.xpose.msra.mxu0 0.0
        %583 = vmatprep.subr.mxu0 0.0
        %584 = vmatpush1.xpose.msra.mxu0 0.0
        %585 = vmatprep.subr.mxu0 0.0
        %586 = vmatpush1.xpose.msra.mxu0 0.0
        %587 = vmatprep.subr.mxu0 0.0
        %588 = vmatpush1.xpose.msra.mxu0 0.0
        %589 = vmatprep.subr.mxu0 0.0
        %590 = vmatpush1.xpose.msra.mxu0 0.0
        %591 = vmatprep.subr.mxu0 0.0
        %592 = vmatpush1.xpose.msra.mxu0 0.0
        %593 = vmatprep.subr.mxu0 0.0
        %594 = vmatpush1.xpose.msra.mxu0 0.0
        %595 = vmatprep.subr.mxu0 0.0
        %596 = vmatpush1.xpose.msra.mxu0 0.0
        %597 = vmatprep.subr.mxu0 0.0
        %598 = vmatpush1.xpose.msra.mxu0 0.0
        %599 = vmatprep.subr.mxu0 0.0
        %600 = vmatpush1.xpose.msra.mxu0 0.0
        %601 = vmatprep.subr.mxu0 0.0
        %602 = vmatpush1.xpose.msra.mxu0 0.0
        %603 = vmatprep.subr.mxu0 0.0
        %604 = vmatpush1.xpose.msra.mxu0 0.0
        %605 = vmatprep.subr.mxu0 0.0
        %606 = vmatpush1.xpose.msra.mxu0 0.0
        %607 = vmatprep.subr.mxu0 0.0
        %608 = vmatpush1.xpose.msra.mxu0 0.0
        %609 = vmatprep.subr.mxu0 0.0
        %610 = vmatpush1.xpose.msra.mxu0 0.0
        %611 = vmatprep.subr.mxu0 0.0
        %612 = vmatpush1.xpose.msra.mxu0 0.0
        %613 = vmatprep.subr.mxu0 0.0
        %614 = vmatpush1.xpose.msra.mxu0 0.0
        %615 = vmatprep.subr.mxu0 0.0
        %616 = vmatpush1.xpose.msra.mxu0 0.0
        %617 = vmatprep.subr.mxu0 0.0
        %618 = vmatpush1.xpose.msra.mxu0 0.0
        %619 = vmatprep.subr.mxu0 0.0
        %620 = vmatpush1.xpose.msra.mxu0 0.0
        %621 = vmatprep.subr.mxu0 0.0
        %622 = vmatpush1.xpose.msra.mxu0 0.0
        %623 = vmatprep.subr.mxu0 0.0
        %624 = vmatpush1.xpose.msra.mxu0 0.0
        %625 = vmatprep.subr.mxu0 0.0
        %626 = vmatpush1.xpose.msra.mxu0 0.0
        %627 = vmatprep.subr.mxu0 0.0
        %628 = vmatpush1.xpose.msra.mxu0 0.0
        %629 = vmatprep.subr.mxu0 0.0
        %630 = vmatpush1.xpose.msra.mxu0 0.0
        %631 = vmatprep.subr.mxu0 0.0
        %632 = vmatpush1.xpose.msra.mxu0 0.0
        %633 = vmatprep.subr.mxu0 0.0
        %634 = vmatpush1.xpose.msra.mxu0 0.0
        %635 = vmatprep.mubr.f32.mxu0 0.0
        %636 = vmatmul.mubr.f32.gmra.mrb[0].mxu0 %v566
        %v637 = vpop.f32.mrb[0].mxu0
        %v638 = vadd.f32 0.0, %v637
        %v639 = vpop.f32.mrb[0].mxu0
        %640 = vdwg.mxu0
        %v641 = vmul.f32 %v638, 0.35355338
        %v642 = vsel %vm563, %v641, -1000000.0
        %v643 = vsel %vm564, %v642, -inf
        %644 = vmax.xlane.f32.xlu0 %v643
        %v645 = vpop.xlane.xlu0 %644
        %v646 = vsub.f32 %v642, %v645
        %v647 = vmul.f32 %v646, 1.442695
        %v648 = vpow.pop %v647
        %v649 = vsel %vm564, %v648, 0.0
        %650 = vadd.xlane.f32.xlu0 %v649
        %v651 = vpop.xlane.xlu0 %650
        %v652 = vrcp.pop %v651
        %v653 = vmul.f32 %v648, %v652
        %v655 = vsel %vm564, %v653, 0
        %657 = vmatprep.subr.mxu0 0.0
        %658 = vmatpush1.msra.mxu0 %v556
        %659 = vmatprep.subr.mxu0 0.0
        %660 = vmatpush1.msra.mxu0 0.0
        %661 = vmatprep.subr.mxu0 0.0
        %662 = vmatpush1.msra.mxu0 0.0
        %663 = vmatprep.subr.mxu0 0.0
        %664 = vmatpush1.msra.mxu0 0.0
        %665 = vmatprep.subr.mxu0 0.0
        %666 = vmatpush1.msra.mxu0 0.0
        %667 = vmatprep.subr.mxu0 0.0
        %668 = vmatpush1.msra.mxu0 0.0
        %669 = vmatprep.subr.mxu0 0.0
        %670 = vmatpush1.msra.mxu0 0.0
        %671 = vmatprep.subr.mxu0 0.0
        %672 = vmatpush1.msra.mxu0 0.0
        %673 = vmatprep.subr.mxu0 0.0
        %674 = vmatpush1.msra.mxu0 0.0
        %675 = vmatprep.subr.mxu0 0.0
        %676 = vmatpush1.msra.mxu0 0.0
        %677 = vmatprep.subr.mxu0 0.0
        %678 = vmatpush1.msra.mxu0 0.0
        %679 = vmatprep.subr.mxu0 0.0
        %680 = vmatpush1.msra.mxu0 0.0
        %681 = vmatprep.subr.mxu0 0.0
        %682 = vmatpush1.msra.mxu0 0.0
        %683 = vmatprep.subr.mxu0 0.0
        %684 = vmatpush1.msra.mxu0 0.0
        %685 = vmatprep.subr.mxu0 0.0
        %686 = vmatpush1.msra.mxu0 0.0
        %687 = vmatprep.subr.mxu0 0.0
        %688 = vmatpush1.msra.mxu0 0.0
        %689 = vmatprep.subr.mxu0 0.0
        %690 = vmatpush1.msra.mxu0 0.0
        %691 = vmatprep.subr.mxu0 0.0
        %692 = vmatpush1.msra.mxu0 0.0
        %693 = vmatprep.subr.mxu0 0.0
        %694 = vmatpush1.msra.mxu0 0.0
        %695 = vmatprep.subr.mxu0 0.0
        %696 = vmatpush1.msra.mxu0 0.0
        %697 = vmatprep.subr.mxu0 0.0
        %698 = vmatpush1.msra.mxu0 0.0
        %699 = vmatprep.subr.mxu0 0.0
        %700 = vmatpush1.msra.mxu0 0.0
        %701 = vmatprep.subr.mxu0 0.0
        %702 = vmatpush1.msra.mxu0 0.0
        %703 = vmatprep.subr.mxu0 0.0
        %704 = vmatpush1.msra.mxu0 0.0
        %705 = vmatprep.subr.mxu0 0.0
        %706 = vmatpush1.msra.mxu0 0.0
        %707 = vmatprep.subr.mxu0 0.0
        %708 = vmatpush1.msra.mxu0 0.0
        %709 = vmatprep.subr.mxu0 0.0
        %710 = vmatpush1.msra.mxu0 0.0
        %711 = vmatprep.subr.mxu0 0.0
        %712 = vmatpush1.msra.mxu0 0.0
        %713 = vmatprep.subr.mxu0 0.0
        %714 = vmatpush1.msra.mxu0 0.0
        %715 = vmatprep.subr.mxu0 0.0
        %716 = vmatpush1.msra.mxu0 0.0
        %717 = vmatprep.subr.mxu0 0.0
        %718 = vmatpush1.msra.mxu0 0.0
        %719 = vmatprep.subr.mxu0 0.0
        %720 = vmatpush1.msra.mxu0 0.0
        %721 = vmatprep.mubr.f32.mxu0 0.0
        %722 = vmatmul.mubr.f32.gmra.mrb[0].mxu0 %v655
        %v723 = vpop.f32.mrb[0].mxu0
        %v724 = vadd.f32 0.0, %v723
        %v725 = vpop.f32.mrb[0].mxu0
        %726 = vdwg.mxu0
        %727 = vrot.lane.b32.xlu0 %v404, 120
        %v728 = vpop.permute.xlu0 %727
        %729 = vrot.lane.b32.xlu0 %v480, 120
        %v730 = vpop.permute.xlu0 %729
        %v731 = vsel %vm564, %v728, 0
        %v733 = vsel %vm564, %v730, 0
        %735 = vmatprep.subr.mxu0 0.0
        %736 = vmatpush1.xpose.msra.mxu0 %v733
        %737 = vmatprep.subr.mxu0 0.0
        %738 = vmatpush1.xpose.msra.mxu0 0.0
        %739 = vmatprep.subr.mxu0 0.0
        %740 = vmatpush1.xpose.msra.mxu0 0.0
        %741 = vmatprep.subr.mxu0 0.0
        %742 = vmatpush1.xpose.msra.mxu0 0.0
        %743 = vmatprep.subr.mxu0 0.0
        %744 = vmatpush1.xpose.msra.mxu0 0.0
        %745 = vmatprep.subr.mxu0 0.0
        %746 = vmatpush1.xpose.msra.mxu0 0.0
        %747 = vmatprep.subr.mxu0 0.0
        %748 = vmatpush1.xpose.msra.mxu0 0.0
        %749 = vmatprep.subr.mxu0 0.0
        %750 = vmatpush1.xpose.msra.mxu0 0.0
        %751 = vmatprep.subr.mxu0 0.0
        %752 = vmatpush1.xpose.msra.mxu0 0.0
        %753 = vmatprep.subr.mxu0 0.0
        %754 = vmatpush1.xpose.msra.mxu0 0.0
        %755 = vmatprep.subr.mxu0 0.0
        %756 = vmatpush1.xpose.msra.mxu0 0.0
        %757 = vmatprep.subr.mxu0 0.0
        %758 = vmatpush1.xpose.msra.mxu0 0.0
        %759 = vmatprep.subr.mxu0 0.0
        %760 = vmatpush1.xpose.msra.mxu0 0.0
        %761 = vmatprep.subr.mxu0 0.0
        %762 = vmatpush1.xpose.msra.mxu0 0.0
        %763 = vmatprep.subr.mxu0 0.0
        %764 = vmatpush1.xpose.msra.mxu0 0.0
        %765 = vmatprep.subr.mxu0 0.0
        %766 = vmatpush1.xpose.msra.mxu0 0.0
        %767 = vmatprep.subr.mxu0 0.0
        %768 = vmatpush1.xpose.msra.mxu0 0.0
        %769 = vmatprep.subr.mxu0 0.0
        %770 = vmatpush1.xpose.msra.mxu0 0.0
        %771 = vmatprep.subr.mxu0 0.0
        %772 = vmatpush1.xpose.msra.mxu0 0.0
        %773 = vmatprep.subr.mxu0 0.0
        %774 = vmatpush1.xpose.msra.mxu0 0.0
        %775 = vmatprep.subr.mxu0 0.0
        %776 = vmatpush1.xpose.msra.mxu0 0.0
        %777 = vmatprep.subr.mxu0 0.0
        %778 = vmatpush1.xpose.msra.mxu0 0.0
        %779 = vmatprep.subr.mxu0 0.0
        %780 = vmatpush1.xpose.msra.mxu0 0.0
        %781 = vmatprep.subr.mxu0 0.0
        %782 = vmatpush1.xpose.msra.mxu0 0.0
        %783 = vmatprep.subr.mxu0 0.0
        %784 = vmatpush1.xpose.msra.mxu0 0.0
        %785 = vmatprep.subr.mxu0 0.0
        %786 = vmatpush1.xpose.msra.mxu0 0.0
        %787 = vmatprep.subr.mxu0 0.0
        %788 = vmatpush1.xpose.msra.mxu0 0.0
        %789 = vmatprep.subr.mxu0 0.0
        %790 = vmatpush1.xpose.msra.mxu0 0.0
        %791 = vmatprep.subr.mxu0 0.0
        %792 = vmatpush1.xpose.msra.mxu0 0.0
        %793 = vmatprep.subr.mxu0 0.0
        %794 = vmatpush1.xpose.msra.mxu0 0.0
        %795 = vmatprep.subr.mxu0 0.0
        %796 = vmatpush1.xpose.msra.mxu0 0.0
        %797 = vmatprep.subr.mxu0 0.0
        %798 = vmatpush1.xpose.msra.mxu0 0.0
        %799 = vmatprep.mubr.f32.mxu0 0.0
        %800 = vmatmul.mubr.f32.gmra.mrb[0].mxu0 %v731
        %v801 = vpop.f32.mrb[0].mxu0
        %v802 = vadd.f32 0.0, %v801
        %v803 = vpop.f32.mrb[0].mxu0
        %804 = vdwg.mxu0
        %v805 = vmul.f32 %v802, 0.35355338
        %v806 = vsel %vm563, %v805, -1000000.0
        %v807 = vsel %vm564, %v806, -inf
        %808 = vmax.xlane.f32.xlu0 %v807
        %v809 = vpop.xlane.xlu0 %808
        %v810 = vsub.f32 %v806, %v809
        %v811 = vmul.f32 %v810, 1.442695
        %v812 = vpow.pop %v811
        %v813 = vsel %vm564, %v812, 0.0
        %814 = vadd.xlane.f32.xlu0 %v813
        %v815 = vpop.xlane.xlu0 %814
        %v816 = vrcp.pop %v815
        %v817 = vmul.f32 %v812, %v816
        %819 = vrot.lane.b32.xlu0 %v556, 120
        %v820 = vpop.permute.xlu0 %819
        %v823 = vsel %vm564, %v817, 0
        %825 = vmatprep.subr.mxu0 0.0
        %826 = vmatpush1.msra.mxu0 %v820
        %827 = vmatprep.subr.mxu0 0.0
        %828 = vmatpush1.msra.mxu0 0.0
        %829 = vmatprep.subr.mxu0 0.0
        %830 = vmatpush1.msra.mxu0 0.0
        %831 = vmatprep.subr.mxu0 0.0
        %832 = vmatpush1.msra.mxu0 0.0
        %833 = vmatprep.subr.mxu0 0.0
        %834 = vmatpush1.msra.mxu0 0.0
        %835 = vmatprep.subr.mxu0 0.0
        %836 = vmatpush1.msra.mxu0 0.0
        %837 = vmatprep.subr.mxu0 0.0
        %838 = vmatpush1.msra.mxu0 0.0
        %839 = vmatprep.subr.mxu0 0.0
        %840 = vmatpush1.msra.mxu0 0.0
        %841 = vmatprep.subr.mxu0 0.0
        %842 = vmatpush1.msra.mxu0 0.0
        %843 = vmatprep.subr.mxu0 0.0
        %844 = vmatpush1.msra.mxu0 0.0
        %845 = vmatprep.subr.mxu0 0.0
        %846 = vmatpush1.msra.mxu0 0.0
        %847 = vmatprep.subr.mxu0 0.0
        %848 = vmatpush1.msra.mxu0 0.0
        %849 = vmatprep.subr.mxu0 0.0
        %850 = vmatpush1.msra.mxu0 0.0
        %851 = vmatprep.subr.mxu0 0.0
        %852 = vmatpush1.msra.mxu0 0.0
        %853 = vmatprep.subr.mxu0 0.0
        %854 = vmatpush1.msra.mxu0 0.0
        %855 = vmatprep.subr.mxu0 0.0
        %856 = vmatpush1.msra.mxu0 0.0
        %857 = vmatprep.subr.mxu0 0.0
        %858 = vmatpush1.msra.mxu0 0.0
        %859 = vmatprep.subr.mxu0 0.0
        %860 = vmatpush1.msra.mxu0 0.0
        %861 = vmatprep.subr.mxu0 0.0
        %862 = vmatpush1.msra.mxu0 0.0
        %863 = vmatprep.subr.mxu0 0.0
        %864 = vmatpush1.msra.mxu0 0.0
        %865 = vmatprep.subr.mxu0 0.0
        %866 = vmatpush1.msra.mxu0 0.0
        %867 = vmatprep.subr.mxu0 0.0
        %868 = vmatpush1.msra.mxu0 0.0
        %869 = vmatprep.subr.mxu0 0.0
        %870 = vmatpush1.msra.mxu0 0.0
        %871 = vmatprep.subr.mxu0 0.0
        %872 = vmatpush1.msra.mxu0 0.0
        %873 = vmatprep.subr.mxu0 0.0
        %874 = vmatpush1.msra.mxu0 0.0
        %875 = vmatprep.subr.mxu0 0.0
        %876 = vmatpush1.msra.mxu0 0.0
        %877 = vmatprep.subr.mxu0 0.0
        %878 = vmatpush1.msra.mxu0 0.0
        %879 = vmatprep.subr.mxu0 0.0
        %880 = vmatpush1.msra.mxu0 0.0
        %881 = vmatprep.subr.mxu0 0.0
        %882 = vmatpush1.msra.mxu0 0.0
        %883 = vmatprep.subr.mxu0 0.0
        %884 = vmatpush1.msra.mxu0 0.0
        %885 = vmatprep.subr.mxu0 0.0
        %886 = vmatpush1.msra.mxu0 0.0
        %887 = vmatprep.subr.mxu0 0.0
        %888 = vmatpush1.msra.mxu0 0.0
        %889 = vmatprep.mubr.f32.mxu0 0.0
        %890 = vmatmul.mubr.f32.gmra.mrb[0].mxu0 %v823
        %v891 = vpop.f32.mrb[0].mxu0
        %v892 = vadd.f32 0.0, %v891
        %v893 = vpop.f32.mrb[0].mxu0
        %894 = vdwg.mxu0
        %895 = vrot.lane.b32.xlu0 %v404, 112
        %v896 = vpop.permute.xlu0 %895
        %897 = vrot.lane.b32.xlu0 %v480, 112
        %v898 = vpop.permute.xlu0 %897
        %v899 = vsel %vm564, %v896, 0
        %v901 = vsel %vm564, %v898, 0
        %903 = vmatprep.subr.mxu0 0.0
        %904 = vmatpush1.xpose.msra.mxu0 %v901
        %905 = vmatprep.subr.mxu0 0.0
        %906 = vmatpush1.xpose.msra.mxu0 0.0
        %907 = vmatprep.subr.mxu0 0.0
        %908 = vmatpush1.xpose.msra.mxu0 0.0
        %909 = vmatprep.subr.mxu0 0.0
        %910 = vmatpush1.xpose.msra.mxu0 0.0
        %911 = vmatprep.subr.mxu0 0.0
        %912 = vmatpush1.xpose.msra.mxu0 0.0
        %913 = vmatprep.subr.mxu0 0.0
        %914 = vmatpush1.xpose.msra.mxu0 0.0
        %915 = vmatprep.subr.mxu0 0.0
        %916 = vmatpush1.xpose.msra.mxu0 0.0
        %917 = vmatprep.subr.mxu0 0.0
        %918 = vmatpush1.xpose.msra.mxu0 0.0
        %919 = vmatprep.subr.mxu0 0.0
        %920 = vmatpush1.xpose.msra.mxu0 0.0
        %921 = vmatprep.subr.mxu0 0.0
        %922 = vmatpush1.xpose.msra.mxu0 0.0
        %923 = vmatprep.subr.mxu0 0.0
        %924 = vmatpush1.xpose.msra.mxu0 0.0
        %925 = vmatprep.subr.mxu0 0.0
        %926 = vmatpush1.xpose.msra.mxu0 0.0
        %927 = vmatprep.subr.mxu0 0.0
        %928 = vmatpush1.xpose.msra.mxu0 0.0
        %929 = vmatprep.subr.mxu0 0.0
        %930 = vmatpush1.xpose.msra.mxu0 0.0
        %931 = vmatprep.subr.mxu0 0.0
        %932 = vmatpush1.xpose.msra.mxu0 0.0
        %933 = vmatprep.subr.mxu0 0.0
        %934 = vmatpush1.xpose.msra.mxu0 0.0
        %935 = vmatprep.subr.mxu0 0.0
        %936 = vmatpush1.xpose.msra.mxu0 0.0
        %937 = vmatprep.subr.mxu0 0.0
        %938 = vmatpush1.xpose.msra.mxu0 0.0
        %939 = vmatprep.subr.mxu0 0.0
        %940 = vmatpush1.xpose.msra.mxu0 0.0
        %941 = vmatprep.subr.mxu0 0.0
        %942 = vmatpush1.xpose.msra.mxu0 0.0
        %943 = vmatprep.subr.mxu0 0.0
        %944 = vmatpush1.xpose.msra.mxu0 0.0
        %945 = vmatprep.subr.mxu0 0.0
        %946 = vmatpush1.xpose.msra.mxu0 0.0
        %947 = vmatprep.subr.mxu0 0.0
        %948 = vmatpush1.xpose.msra.mxu0 0.0
        %949 = vmatprep.subr.mxu0 0.0
        %950 = vmatpush1.xpose.msra.mxu0 0.0
        %951 = vmatprep.subr.mxu0 0.0
        %952 = vmatpush1.xpose.msra.mxu0 0.0
        %953 = vmatprep.subr.mxu0 0.0
        %954 = vmatpush1.xpose.msra.mxu0 0.0
        %955 = vmatprep.subr.mxu0 0.0
        %956 = vmatpush1.xpose.msra.mxu0 0.0
        %957 = vmatprep.subr.mxu0 0.0
        %958 = vmatpush1.xpose.msra.mxu0 0.0
        %959 = vmatprep.subr.mxu0 0.0
        %960 = vmatpush1.xpose.msra.mxu0 0.0
        %961 = vmatprep.subr.mxu0 0.0
        %962 = vmatpush1.xpose.msra.mxu0 0.0
        %963 = vmatprep.subr.mxu0 0.0
        %964 = vmatpush1.xpose.msra.mxu0 0.0
        %965 = vmatprep.subr.mxu0 0.0
        %966 = vmatpush1.xpose.msra.mxu0 0.0
        %967 = vmatprep.mubr.f32.mxu0 0.0
        %968 = vmatmul.mubr.f32.gmra.mrb[0].mxu0 %v899
        %v969 = vpop.f32.mrb[0].mxu0
        %v970 = vadd.f32 0.0, %v969
        %v971 = vpop.f32.mrb[0].mxu0
        %972 = vdwg.mxu0
        %v973 = vmul.f32 %v970, 0.35355338
        %v974 = vsel %vm563, %v973, -1000000.0
        %v975 = vsel %vm564, %v974, -inf
        %976 = vmax.xlane.f32.xlu0 %v975
        %v977 = vpop.xlane.xlu0 %976
        %v978 = vsub.f32 %v974, %v977
        %v979 = vmul.f32 %v978, 1.442695
        %v980 = vpow.pop %v979
        %v981 = vsel %vm564, %v980, 0.0
        %982 = vadd.xlane.f32.xlu0 %v981
        %v983 = vpop.xlane.xlu0 %982
        %v984 = vrcp.pop %v983
        %v985 = vmul.f32 %v980, %v984
        %986 = vrot.lane.b32.xlu0 %v556, 112
        %v987 = vpop.permute.xlu0 %986
        %v990 = vsel %vm564, %v985, 0
        %992 = vmatprep.subr.mxu0 0.0
        %993 = vmatpush1.msra.mxu0 %v987
        %994 = vmatprep.subr.mxu0 0.0
        %995 = vmatpush1.msra.mxu0 0.0
        %996 = vmatprep.subr.mxu0 0.0
        %997 = vmatpush1.msra.mxu0 0.0
        %998 = vmatprep.subr.mxu0 0.0
        %999 = vmatpush1.msra.mxu0 0.0
        %1000 = vmatprep.subr.mxu0 0.0
        %1001 = vmatpush1.msra.mxu0 0.0
        %1002 = vmatprep.subr.mxu0 0.0
        %1003 = vmatpush1.msra.mxu0 0.0
        %1004 = vmatprep.subr.mxu0 0.0
        %1005 = vmatpush1.msra.mxu0 0.0
        %1006 = vmatprep.subr.mxu0 0.0
        %1007 = vmatpush1.msra.mxu0 0.0
        %1008 = vmatprep.subr.mxu0 0.0
        %1009 = vmatpush1.msra.mxu0 0.0
        %1010 = vmatprep.subr.mxu0 0.0
        %1011 = vmatpush1.msra.mxu0 0.0
        %1012 = vmatprep.subr.mxu0 0.0
        %1013 = vmatpush1.msra.mxu0 0.0
        %1014 = vmatprep.subr.mxu0 0.0
        %1015 = vmatpush1.msra.mxu0 0.0
        %1016 = vmatprep.subr.mxu0 0.0
        %1017 = vmatpush1.msra.mxu0 0.0
        %1018 = vmatprep.subr.mxu0 0.0
        %1019 = vmatpush1.msra.mxu0 0.0
        %1020 = vmatprep.subr.mxu0 0.0
        %1021 = vmatpush1.msra.mxu0 0.0
        %1022 = vmatprep.subr.mxu0 0.0
        %1023 = vmatpush1.msra.mxu0 0.0
        %1024 = vmatprep.subr.mxu0 0.0
        %1025 = vmatpush1.msra.mxu0 0.0
        %1026 = vmatprep.subr.mxu0 0.0
        %1027 = vmatpush1.msra.mxu0 0.0
        %1028 = vmatprep.subr.mxu0 0.0
        %1029 = vmatpush1.msra.mxu0 0.0
        %1030 = vmatprep.subr.mxu0 0.0
        %1031 = vmatpush1.msra.mxu0 0.0
        %1032 = vmatprep.subr.mxu0 0.0
        %1033 = vmatpush1.msra.mxu0 0.0
        %1034 = vmatprep.subr.mxu0 0.0
        %1035 = vmatpush1.msra.mxu0 0.0
        %1036 = vmatprep.subr.mxu0 0.0
        %1037 = vmatpush1.msra.mxu0 0.0
        %1038 = vmatprep.subr.mxu0 0.0
        %1039 = vmatpush1.msra.mxu0 0.0
        %1040 = vmatprep.subr.mxu0 0.0
        %1041 = vmatpush1.msra.mxu0 0.0
        %1042 = vmatprep.subr.mxu0 0.0
        %1043 = vmatpush1.msra.mxu0 0.0
        %1044 = vmatprep.subr.mxu0 0.0
        %1045 = vmatpush1.msra.mxu0 0.0
        %1046 = vmatprep.subr.mxu0 0.0
        %1047 = vmatpush1.msra.mxu0 0.0
        %1048 = vmatprep.subr.mxu0 0.0
        %1049 = vmatpush1.msra.mxu0 0.0
        %1050 = vmatprep.subr.mxu0 0.0
        %1051 = vmatpush1.msra.mxu0 0.0
        %1052 = vmatprep.subr.mxu0 0.0
        %1053 = vmatpush1.msra.mxu0 0.0
        %1054 = vmatprep.subr.mxu0 0.0
        %1055 = vmatpush1.msra.mxu0 0.0
        %1056 = vmatprep.mubr.f32.mxu0 0.0
        %1057 = vmatmul.mubr.f32.gmra.mrb[0].mxu0 %v990
        %v1058 = vpop.f32.mrb[0].mxu0
        %v1059 = vadd.f32 0.0, %v1058
        %v1060 = vpop.f32.mrb[0].mxu0
        %1061 = vdwg.mxu0
        %1062 = vrot.lane.b32.xlu0 %v404, 104
        %v1063 = vpop.permute.xlu0 %1062
        %1064 = vrot.lane.b32.xlu0 %v480, 104
        %v1065 = vpop.permute.xlu0 %1064
        %v1066 = vsel %vm564, %v1063, 0
        %v1068 = vsel %vm564, %v1065, 0
        %1070 = vmatprep.subr.mxu0 0.0
        %1071 = vmatpush1.xpose.msra.mxu0 %v1068
        %1072 = vmatprep.subr.mxu0 0.0
        %1073 = vmatpush1.xpose.msra.mxu0 0.0
        %1074 = vmatprep.subr.mxu0 0.0
        %1075 = vmatpush1.xpose.msra.mxu0 0.0
        %1076 = vmatprep.subr.mxu0 0.0
        %1077 = vmatpush1.xpose.msra.mxu0 0.0
        %1078 = vmatprep.subr.mxu0 0.0
        %1079 = vmatpush1.xpose.msra.mxu0 0.0
        %1080 = vmatprep.subr.mxu0 0.0
        %1081 = vmatpush1.xpose.msra.mxu0 0.0
        %1082 = vmatprep.subr.mxu0 0.0
        %1083 = vmatpush1.xpose.msra.mxu0 0.0
        %1084 = vmatprep.subr.mxu0 0.0
        %1085 = vmatpush1.xpose.msra.mxu0 0.0
        %1086 = vmatprep.subr.mxu0 0.0
        %1087 = vmatpush1.xpose.msra.mxu0 0.0
        %1088 = vmatprep.subr.mxu0 0.0
        %1089 = vmatpush1.xpose.msra.mxu0 0.0
        %1090 = vmatprep.subr.mxu0 0.0
        %1091 = vmatpush1.xpose.msra.mxu0 0.0
        %1092 = vmatprep.subr.mxu0 0.0
        %1093 = vmatpush1.xpose.msra.mxu0 0.0
        %1094 = vmatprep.subr.mxu0 0.0
        %1095 = vmatpush1.xpose.msra.mxu0 0.0
        %1096 = vmatprep.subr.mxu0 0.0
        %1097 = vmatpush1.xpose.msra.mxu0 0.0
        %1098 = vmatprep.subr.mxu0 0.0
        %1099 = vmatpush1.xpose.msra.mxu0 0.0
        %1100 = vmatprep.subr.mxu0 0.0
        %1101 = vmatpush1.xpose.msra.mxu0 0.0
        %1102 = vmatprep.subr.mxu0 0.0
        %1103 = vmatpush1.xpose.msra.mxu0 0.0
        %1104 = vmatprep.subr.mxu0 0.0
        %1105 = vmatpush1.xpose.msra.mxu0 0.0
        %1106 = vmatprep.subr.mxu0 0.0
        %1107 = vmatpush1.xpose.msra.mxu0 0.0
        %1108 = vmatprep.subr.mxu0 0.0
        %1109 = vmatpush1.xpose.msra.mxu0 0.0
        %1110 = vmatprep.subr.mxu0 0.0
        %1111 = vmatpush1.xpose.msra.mxu0 0.0
        %1112 = vmatprep.subr.mxu0 0.0
        %1113 = vmatpush1.xpose.msra.mxu0 0.0
        %1114 = vmatprep.subr.mxu0 0.0
        %1115 = vmatpush1.xpose.msra.mxu0 0.0
        %1116 = vmatprep.subr.mxu0 0.0
        %1117 = vmatpush1.xpose.msra.mxu0 0.0
        %1118 = vmatprep.subr.mxu0 0.0
        %1119 = vmatpush1.xpose.msra.mxu0 0.0
        %1120 = vmatprep.subr.mxu0 0.0
        %1121 = vmatpush1.xpose.msra.mxu0 0.0
        %1122 = vmatprep.subr.mxu0 0.0
        %1123 = vmatpush1.xpose.msra.mxu0 0.0
        %1124 = vmatprep.subr.mxu0 0.0
        %1125 = vmatpush1.xpose.msra.mxu0 0.0
        %1126 = vmatprep.subr.mxu0 0.0
        %1127 = vmatpush1.xpose.msra.mxu0 0.0
        %1128 = vmatprep.subr.mxu0 0.0
        %1129 = vmatpush1.xpose.msra.mxu0 0.0
        %1130 = vmatprep.subr.mxu0 0.0
        %1131 = vmatpush1.xpose.msra.mxu0 0.0
        %1132 = vmatprep.subr.mxu0 0.0
        %1133 = vmatpush1.xpose.msra.mxu0 0.0
        %1134 = vmatprep.mubr.f32.mxu0 0.0
        %1135 = vmatmul.mubr.f32.gmra.mrb[0].mxu0 %v1066
        %v1136 = vpop.f32.mrb[0].mxu0
        %v1137 = vadd.f32 0.0, %v1136
        %v1138 = vpop.f32.mrb[0].mxu0
        %1139 = vdwg.mxu0
        %v1140 = vmul.f32 %v1137, 0.35355338
        %v1141 = vsel %vm563, %v1140, -1000000.0
        %v1142 = vsel %vm564, %v1141, -inf
        %1143 = vmax.xlane.f32.xlu0 %v1142
        %v1144 = vpop.xlane.xlu0 %1143
        %v1145 = vsub.f32 %v1141, %v1144
        %v1146 = vmul.f32 %v1145, 1.442695
        %v1147 = vpow.pop %v1146
        %v1148 = vsel %vm564, %v1147, 0.0
        %1149 = vadd.xlane.f32.xlu0 %v1148
        %v1150 = vpop.xlane.xlu0 %1149
        %v1151 = vrcp.pop %v1150
        %v1152 = vmul.f32 %v1147, %v1151
        %1153 = vrot.lane.b32.xlu0 %v556, 104
        %v1154 = vpop.permute.xlu0 %1153
        %v1157 = vsel %vm564, %v1152, 0
        %1159 = vmatprep.subr.mxu0 0.0
        %1160 = vmatpush1.msra.mxu0 %v1154
        %1161 = vmatprep.subr.mxu0 0.0
        %1162 = vmatpush1.msra.mxu0 0.0
        %1163 = vmatprep.subr.mxu0 0.0
        %1164 = vmatpush1.msra.mxu0 0.0
        %1165 = vmatprep.subr.mxu0 0.0
        %1166 = vmatpush1.msra.mxu0 0.0
        %1167 = vmatprep.subr.mxu0 0.0
        %1168 = vmatpush1.msra.mxu0 0.0
        %1169 = vmatprep.subr.mxu0 0.0
        %1170 = vmatpush1.msra.mxu0 0.0
        %1171 = vmatprep.subr.mxu0 0.0
        %1172 = vmatpush1.msra.mxu0 0.0
        %1173 = vmatprep.subr.mxu0 0.0
        %1174 = vmatpush1.msra.mxu0 0.0
        %1175 = vmatprep.subr.mxu0 0.0
        %1176 = vmatpush1.msra.mxu0 0.0
        %1177 = vmatprep.subr.mxu0 0.0
        %1178 = vmatpush1.msra.mxu0 0.0
        %1179 = vmatprep.subr.mxu0 0.0
        %1180 = vmatpush1.msra.mxu0 0.0
        %1181 = vmatprep.subr.mxu0 0.0
        %1182 = vmatpush1.msra.mxu0 0.0
        %1183 = vmatprep.subr.mxu0 0.0
        %1184 = vmatpush1.msra.mxu0 0.0
        %1185 = vmatprep.subr.mxu0 0.0
        %1186 = vmatpush1.msra.mxu0 0.0
        %1187 = vmatprep.subr.mxu0 0.0
        %1188 = vmatpush1.msra.mxu0 0.0
        %1189 = vmatprep.subr.mxu0 0.0
        %1190 = vmatpush1.msra.mxu0 0.0
        %1191 = vmatprep.subr.mxu0 0.0
        %1192 = vmatpush1.msra.mxu0 0.0
        %1193 = vmatprep.subr.mxu0 0.0
        %1194 = vmatpush1.msra.mxu0 0.0
        %1195 = vmatprep.subr.mxu0 0.0
        %1196 = vmatpush1.msra.mxu0 0.0
        %1197 = vmatprep.subr.mxu0 0.0
        %1198 = vmatpush1.msra.mxu0 0.0
        %1199 = vmatprep.subr.mxu0 0.0
        %1200 = vmatpush1.msra.mxu0 0.0
        %1201 = vmatprep.subr.mxu0 0.0
        %1202 = vmatpush1.msra.mxu0 0.0
        %1203 = vmatprep.subr.mxu0 0.0
        %1204 = vmatpush1.msra.mxu0 0.0
        %1205 = vmatprep.subr.mxu0 0.0
        %1206 = vmatpush1.msra.mxu0 0.0
        %1207 = vmatprep.subr.mxu0 0.0
        %1208 = vmatpush1.msra.mxu0 0.0
        %1209 = vmatprep.subr.mxu0 0.0
        %1210 = vmatpush1.msra.mxu0 0.0
        %1211 = vmatprep.subr.mxu0 0.0
        %1212 = vmatpush1.msra.mxu0 0.0
        %1213 = vmatprep.subr.mxu0 0.0
        %1214 = vmatpush1.msra.mxu0 0.0
        %1215 = vmatprep.subr.mxu0 0.0
        %1216 = vmatpush1.msra.mxu0 0.0
        %1217 = vmatprep.subr.mxu0 0.0
        %1218 = vmatpush1.msra.mxu0 0.0
        %1219 = vmatprep.subr.mxu0 0.0
        %1220 = vmatpush1.msra.mxu0 0.0
        %1221 = vmatprep.subr.mxu0 0.0
        %1222 = vmatpush1.msra.mxu0 0.0
        %1223 = vmatprep.mubr.f32.mxu0 0.0
        %1224 = vmatmul.mubr.f32.gmra.mrb[0].mxu0 %v1157
        %v1225 = vpop.f32.mrb[0].mxu0
        %v1226 = vadd.f32 0.0, %v1225
        %v1227 = vpop.f32.mrb[0].mxu0
        %1228 = vdwg.mxu0
        %1230 = vrot.lane.b32.xlu0 %v892, 8
        %v1231 = vpop.permute.xlu0 %1230
        %1234 = vrot.lane.b32.xlu0 %v1059, 16
        %v1235 = vpop.permute.xlu0 %1234
        %1238 = vrot.lane.b32.xlu0 %v1226, 24
        %v1239 = vpop.permute.xlu0 %1238
        %v1241 = vsel %vm564, %v724, %v1231
        %v1242 = vsel %vm333, %v1241, %v1235
        %vm1243 = vcmask 195584
        %v1244 = vsel %vm1243, %v1242, %v1239
        %v1245 = vld [vmem:[%s7] sm:$0xff]
        %v1246 = vld [vmem:[%s7 + $0x8] sm:$0xff]
        %v1247 = vld [vmem:[%s7 + $0x10] sm:$0xff]
        %v1248 = vld [vmem:[%s7 + $0x18] sm:$0xff]
        %vm1249 = vcmask 261120
        %v1251 = vsel %vm1249, %v1244, 0
        %1253 = vmatprep.subr.mxu0 0.0
        %1254 = vmatpush1.msra.mxu0 %v1245
        %1255 = vmatprep.subr.mxu0 0.0
        %1256 = vmatpush1.msra.mxu0 %v1246
        %1257 = vmatprep.subr.mxu0 0.0
        %1258 = vmatpush1.msra.mxu0 %v1247
        %1259 = vmatprep.subr.mxu0 0.0
        %1260 = vmatpush1.msra.mxu0 %v1248
        %1261 = vmatprep.subr.mxu0 0.0
        %1262 = vmatpush1.msra.mxu0 0.0
        %1263 = vmatprep.subr.mxu0 0.0
        %1264 = vmatpush1.msra.mxu0 0.0
        %1265 = vmatprep.subr.mxu0 0.0
        %1266 = vmatpush1.msra.mxu0 0.0
        %1267 = vmatprep.subr.mxu0 0.0
        %1268 = vmatpush1.msra.mxu0 0.0
        %1269 = vmatprep.subr.mxu0 0.0
        %1270 = vmatpush1.msra.mxu0 0.0
        %1271 = vmatprep.subr.mxu0 0.0
        %1272 = vmatpush1.msra.mxu0 0.0
        %1273 = vmatprep.subr.mxu0 0.0
        %1274 = vmatpush1.msra.mxu0 0.0
        %1275 = vmatprep.subr.mxu0 0.0
        %1276 = vmatpush1.msra.mxu0 0.0
        %1277 = vmatprep.subr.mxu0 0.0
        %1278 = vmatpush1.msra.mxu0 0.0
        %1279 = vmatprep.subr.mxu0 0.0
        %1280 = vmatpush1.msra.mxu0 0.0
        %1281 = vmatprep.subr.mxu0 0.0
        %1282 = vmatpush1.msra.mxu0 0.0
        %1283 = vmatprep.subr.mxu0 0.0
        %1284 = vmatpush1.msra.mxu0 0.0
        %1285 = vmatprep.subr.mxu0 0.0
        %1286 = vmatpush1.msra.mxu0 0.0
        %1287 = vmatprep.subr.mxu0 0.0
        %1288 = vmatpush1.msra.mxu0 0.0
        %1289 = vmatprep.subr.mxu0 0.0
        %1290 = vmatpush1.msra.mxu0 0.0
        %1291 = vmatprep.subr.mxu0 0.0
        %1292 = vmatpush1.msra.mxu0 0.0
        %1293 = vmatprep.subr.mxu0 0.0
        %1294 = vmatpush1.msra.mxu0 0.0
        %1295 = vmatprep.subr.mxu0 0.0
        %1296 = vmatpush1.msra.mxu0 0.0
        %1297 = vmatprep.subr.mxu0 0.0
        %1298 = vmatpush1.msra.mxu0 0.0
        %1299 = vmatprep.subr.mxu0 0.0
        %1300 = vmatpush1.msra.mxu0 0.0
        %1301 = vmatprep.subr.mxu0 0.0
        %1302 = vmatpush1.msra.mxu0 0.0
        %1303 = vmatprep.subr.mxu0 0.0
        %1304 = vmatpush1.msra.mxu0 0.0
        %1305 = vmatprep.subr.mxu0 0.0
        %1306 = vmatpush1.msra.mxu0 0.0
        %1307 = vmatprep.subr.mxu0 0.0
        %1308 = vmatpush1.msra.mxu0 0.0
        %1309 = vmatprep.subr.mxu0 0.0
        %1310 = vmatpush1.msra.mxu0 0.0
        %1311 = vmatprep.subr.mxu0 0.0
        %1312 = vmatpush1.msra.mxu0 0.0
        %1313 = vmatprep.subr.mxu0 0.0
        %1314 = vmatpush1.msra.mxu0 0.0
        %1315 = vmatprep.subr.mxu0 0.0
        %1316 = vmatpush1.msra.mxu0 0.0
        %1317 = vmatprep.mubr.f32.mxu0 0.0
        %1318 = vmatmul.mubr.f32.gmra.mrb[0].mxu0 %v1251
        %v1319 = vpop.f32.mrb[0].mxu0
        %v1320 = vadd.f32 0.0, %v1319
        %v1321 = vpop.f32.mrb[0].mxu0
        %1322 = vdwg.mxu0
        %1323 = vst.msk [vmem:[%s317] sm:$0xff] %vm1249, %v1320
        %s1324 = sand.u32 %s199, 1
        %s1325 = scalar_lea.sflag [#allocation6], %s1324
        %s1326 = sand.u32 %s199, 1
        %s1327 = smul.addr %s1326, 8
        %s1328 = scalar_lea.vmem [#allocation7], %s1327
        // Predicated region
        $region53: #{multi_head_attention.1} parent=47 // pred_check
          %p1329 = pneg %p209
        $region54: #{multi_head_attention.1} parent=47 // pred_check_branch
          %1331 = sbr.rel (%p1329) target = $region56
        $region55: #{multi_head_attention.1} parent=47 // pred_region
          %s1333 = ssub.s32 128, 128
          %1334 = vsyncadd %s1325, %s1333
          %s1335 = smul.addr %s29, 128
          %s1336 = scalar_lea.hbm %s8, %s1335
          %s1338 = sshll.u32 %s1328, 4
          %s1339 = int_to_ptr.vmem [resolvable:$true] %s1338
          %1341 = dma.vmem_to_hbm [thread:$0]  %s1339, 128, %s1336, %s1325
        $region56: #{multi_head_attention.1} parent=47 // pred_fallthru
          _
      $region48: #{multi_head_attention.1} parent=5 // pred_fallthru
        _
      %p1342 = scmp.le.s32.totalorder 2, %s24
      // Predicated region
      $region57: #{multi_head_attention.1} parent=5 // pred_check
        %p1343 = pneg %p1342
      $region58: #{multi_head_attention.1} parent=5 // pred_check_branch
        %1345 = sbr.rel (%p1343) target = $region60
      $region59: #{multi_head_attention.1} parent=5 // pred_region
        %s1346 = ssub.s32 %s24, 2
        // Predicated region
        $region61: #{multi_head_attention.1} parent=59 // pred_check
          %p1347 = pneg %p215
        $region62: #{multi_head_attention.1} parent=59 // pred_check_branch
          %1349 = sbr.rel (%p1347) target = $region64
        $region63: #{multi_head_attention.1} parent=59 // pred_region
          %s1350 = sand.u32 %s200, 1
          %s1351 = scalar_lea.sflag [#allocation6], %s1350
          %s1352 = sand.u32 %s200, 1
          %s1353 = smul.addr %s1352, 8
          %s1354 = scalar_lea.vmem [#allocation7], %s1353
          %1355 = dma.done %s1351, 128
        $region64: #{multi_head_attention.1} parent=59 // pred_fallthru
          _
      $region60: #{multi_head_attention.1} parent=5 // pred_fallthru
        _
    $region6: #{multi_head_attention.1} parent=1 // loop_footer
      %s28 = sadd.s32 1, %s24
    $region7: #{multi_head_attention.1} parent=1 // loop_footer_branch
      %23 = sbr.rel target = $region3
    $region8: #{multi_head_attention.1} parent=1 // loop_exit
      _
    %1356 = vsyncpa [#allocation5], 1
    %s1357 = scalar_lea.sflag [#allocation5], 1
    %1358 = vsyncpa %s1357, 1
    %1359 = vsyncpa [#allocation6], 1
    %s1360 = scalar_lea.sflag [#allocation6], 1
    %1361 = vsyncpa %s1360, 1

</llo_original>
